<compile_context>
chip_gen: v6e
topology: v6e:2x2x1
jax: 0.10.0
libtpu: 0.0.40
codegen_flags: <defaults>
</compile_context>

<pallas_src>
import functools
import math

import jax
import jax.numpy as jnp
from jax import lax
from jax.experimental import pallas as pl
from jax.experimental.pallas import tpu as pltpu

VMEM = pltpu.MemorySpace.VMEM
LANES = 128          # lane width for the auxiliary (emotion / diag) outputs and out padding
MEM_PAD = 1024       # reflection memory length padded from 1000 to a multiple of 128


# --------------------------- one-time K/V projection --------------------------

def _kv_prep_kernel(mem_ref, w_ref, b_ref, k_ref, v_ref):
    kv = jnp.dot(mem_ref[...], w_ref[...],
                 preferred_element_type=jnp.float32) + b_ref[...]
    C = k_ref.shape[-1]
    k_ref[...] = kv[:, :C].astype(k_ref.dtype)
    v_ref[...] = kv[:, C:].astype(v_ref.dtype)


def _project_reflection_kv(mem_padded, w_kv, b_kv):
    """Fused [C,2C] projection of the (padded) reflection memory, run once at prep."""
    Mpad, C = mem_padded.shape
    return pl.pallas_call(
        _kv_prep_kernel,
        out_shape=(jax.ShapeDtypeStruct((Mpad, C), jnp.float32),
                   jax.ShapeDtypeStruct((Mpad, C), jnp.float32)),
        in_specs=[pl.BlockSpec(memory_space=VMEM)] * 3,
        out_specs=(pl.BlockSpec(memory_space=VMEM),
                   pl.BlockSpec(memory_space=VMEM)),
    )(mem_padded, w_kv, b_kv)


# ------------------------------ fused forward kernel ---------------------------

def _consciousness_kernel(x_ref, ib_ref, pool_ref, mb_ref,
                          w_sm, b_sm, w_qkv, b_qkv, w_io, b_io,
                          mkT_ref, mv_ref, w_mq, b_mq, w_mo, b_mo,
                          w_emo, b_emo, w_meta, b_meta,
                          out_ref, emo_ref, diag_ref,
                          *, n_intro_heads, n_mem_heads, approx_recip):
    f32 = jnp.float32
    x = x_ref[...]                                   # [BS, H] (batch folded into rows)
    C = w_sm.shape[1]

    def mm(a, w):
        # cast the activation operand to the (possibly bf16) weight dtype at the MXU
        # boundary; accumulation stays f32.
        return jnp.dot(a.astype(w.dtype), w, preferred_element_type=f32)

    # self model
    self_repr = mm(x, w_sm[...]) + b_sm[...]                                     # [BS, C]

    # fused QKV projection (Q columns pre-scaled by 1/sqrt(d_i))
    qkv = mm(self_repr, w_qkv[...]) + b_qkv[...]                                 # [BS, 3C]

    # introspection self-attention, block-diagonal over the folded batch
    intro_bias = ib_ref[...]                                                     # [BS, BS]
    d_i = C // n_intro_heads
    ctx_parts = []
    p_avg = None
    for h in range(n_intro_heads):
        qh = qkv[:, h * d_i:(h + 1) * d_i]
        kh = qkv[:, C + h * d_i:C + (h + 1) * d_i]
        vh = qkv[:, 2 * C + h * d_i:2 * C + (h + 1) * d_i]
        s = lax.dot_general(qh, kh, (((1,), (1,)), ((), ())),
                            preferred_element_type=f32) + intro_bias             # [BS, BS]
        s = s - jnp.max(s, axis=-1, keepdims=True)
        e = jnp.exp(s)
        inv = pl.reciprocal(jnp.sum(e, axis=-1, keepdims=True), approx=approx_recip)
        p = e * inv
        p_avg = p if p_avg is None else p_avg + p
        ctx_parts.append(jnp.dot(p, vh, preferred_element_type=f32))
    ctx = jnp.concatenate(ctx_parts, axis=-1)                                    # [BS, C]
    p_avg = p_avg * (1.0 / n_intro_heads)

    introspected = mm(ctx, w_io[...]) + b_io[...]                                # [BS, C]

    # memory cross-attention against cached, pre-projected, padded K/V
    # (K cached pre-transposed -> plain [BS,d] x [d,Mpad] score matmul, no XLU transpose)
    mq = mm(introspected, w_mq[...]) + b_mq[...]                                 # [BS, C]
    mem_bias = mb_ref[...]                                                       # [1, Mpad]
    d_m = C // n_mem_heads
    mctx_parts = []
    for h in range(n_mem_heads):
        qh = mq[:, h * d_m:(h + 1) * d_m]
        kTh = mkT_ref[h * d_m:(h + 1) * d_m, :]        # sublane slice of [C, Mpad]
        s = mm(qh, kTh) + mem_bias                                                # [BS, Mpad]
        s = s - jnp.max(s, axis=-1, keepdims=True)
        e = jnp.exp(s)
        inv = pl.reciprocal(jnp.sum(e, axis=-1, keepdims=True), approx=approx_recip)
        p = e * inv
        vh = mv_ref[:, h * d_m:(h + 1) * d_m]                                     # [Mpad, d_m]
        mctx_parts.append(jnp.dot(p.astype(vh.dtype), vh, preferred_element_type=f32))
    mctx = jnp.concatenate(mctx_parts, axis=-1)                                   # [BS, C]
    memory_context = mm(mctx, w_mo[...]) + b_mo[...]

    # emotion head on per-batch mean-pooled introspected states (lane-padded to 128)
    intro_mean = jnp.dot(pool_ref[...], introspected,
                         preferred_element_type=f32)                              # [B, C]
    logits = mm(intro_mean, w_emo[...]) + b_emo[...]                              # [B, 128]
    logits = logits - jnp.max(logits, axis=-1, keepdims=True)
    e = jnp.exp(logits)
    inv = pl.reciprocal(jnp.sum(e, axis=-1, keepdims=True), approx=approx_recip)
    emo_ref[...] = (e * inv).astype(emo_ref.dtype)

    # meta cognition (fused residual add + linear; output width lane-padded to 128)
    y = mm(memory_context + introspected, w_meta[...]) + b_meta[...]              # [BS, Hpad]
    out_ref[...] = y.astype(out_ref.dtype)

    # diagnostics packed into one lane-dense row
    self_sum = jnp.sum(jnp.sum(self_repr, axis=1, keepdims=True),
                       axis=0, keepdims=True)                                     # [1, 1]
    focus = jnp.mean(jnp.max(p_avg, axis=-1, keepdims=True),
                     axis=0, keepdims=True)                                       # [1, 1]
    depth = jnp.mean(jnp.sqrt(jnp.sum(introspected * introspected,
                                      axis=-1, keepdims=True)),
                     axis=0, keepdims=True)                                       # [1, 1]
    lane = lax.broadcasted_iota(jnp.int32, (1, diag_ref.shape[-1]), 1)
    row = jnp.where(lane == 0, self_sum,
                    jnp.where(lane == 1, focus,
                              jnp.where(lane == 2, depth, 0.0)))
    diag_ref[...] = row.astype(diag_ref.dtype)


@functools.partial(jax.jit,
                   static_argnames=("intro_heads", "mem_heads",
                                    "n_emotions", "approx_recip"))
def forward_device(hidden, prep, *, intro_heads, mem_heads, n_emotions, approx_recip):
    B, S, H = hidden.shape
    BS = B * S
    C = prep["w_sm"].shape[1]
    Hpad = prep["w_meta"].shape[1]

    x2d = hidden.reshape(BS, H).astype(jnp.float32)
    # block-diagonal additive bias for the folded-batch self-attention, and the
    # per-batch mean-pool matrix (both constant-folded under jit).
    rb = jnp.arange(BS, dtype=jnp.int32) // S
    intro_bias = jnp.where(rb[:, None] == rb[None, :], 0.0, -1e30).astype(jnp.float32)
    pool = (jnp.arange(B, dtype=jnp.int32)[:, None] == rb[None, :]).astype(jnp.float32) / S

    kernel = functools.partial(_consciousness_kernel,
                               n_intro_heads=intro_heads,
                               n_mem_heads=mem_heads,
                               approx_recip=approx_recip)
    args = (x2d, intro_bias, pool, prep["mem_bias"],
            prep["w_sm"], prep["b_sm"], prep["w_qkv"], prep["b_qkv"],
            prep["w_io"], prep["b_io"], prep["mkT"], prep["mv"],
            prep["w_mq"], prep["b_mq"], prep["w_mo"], prep["b_mo"],
            prep["w_emo"], prep["b_emo"], prep["w_meta"], prep["b_meta"])

    out_pad, emo, diag = pl.pallas_call(
        kernel,
        out_shape=(jax.ShapeDtypeStruct((BS, Hpad), jnp.float32),
                   jax.ShapeDtypeStruct((B, LANES), jnp.float32),
                   jax.ShapeDtypeStruct((1, LANES), jnp.float32)),
        in_specs=[pl.BlockSpec(memory_space=VMEM)] * len(args),
        out_specs=(pl.BlockSpec(memory_space=VMEM),
                   pl.BlockSpec(memory_space=VMEM),
                   pl.BlockSpec(memory_space=VMEM)),
    )(*args)

    out = out_pad[:, :H].reshape(B, S, H).astype(hidden.dtype)
    self_aw = jax.nn.sigmoid(diag[0, 0] / (BS * C))
    focus = diag[0, 1]
    depth = diag[0, 2]
    emo_probs = emo[:, :n_emotions]
    emo_idx = jnp.argmax(emo_probs, axis=-1)
    return out, emo_probs, self_aw, focus, depth, emo_idx


# ------------------------- parameters (deterministic) --------------------------

def init_params(key, hidden_size, consciousness_dim):
    """torch-Linear-layout parameters ([out, in] weights) used by the reference."""
    H, C = hidden_size, consciousness_dim
    keys = jax.random.split(key, 16)

    def lin(k, out, inp):
        kw, kb = jax.random.split(k)
        bound = 1.0 / math.sqrt(inp)
        w = jax.random.uniform(kw, (out, inp), jnp.float32, -bound, bound)
        b = jax.random.uniform(kb, (out,), jnp.float32, -bound, bound)
        return (w, b)

    return {
        "self_model": lin(keys[0], C, H),
        "intro_q": lin(keys[1], C, C),
        "intro_k": lin(keys[2], C, C),
        "intro_v": lin(keys[3], C, C),
        "intro_o": lin(keys[4], C, C),
        "mem_q": lin(keys[5], C, C),
        "mem_k": lin(keys[6], C, C),
        "mem_v": lin(keys[7], C, C),
        "mem_o": lin(keys[8], C, C),
        "meta": lin(keys[9], H, C),
        "emotion_cls": lin(keys[10], 10, C),
        "emotion_states": jax.random.normal(keys[11], (10, C), jnp.float32),   # unused in forward
        "reflection_memory": jax.random.normal(keys[12], (1000, C), jnp.float32),
    }


def prepare_params(params, intro_heads, mem_heads, *, param_dtype=jnp.bfloat16,
                   mem_pad=MEM_PAD, approx_recip=None):
    """One-time prep: pre-transposed [in,out] weights (cast to param_dtype), fused QKV /
    KV weights, folded softmax scales, lane-padded emotion & meta heads, additive memory
    mask bias, cached reflection-memory K (pre-transposed) and V."""
    C = params["self_model"][0].shape[0]
    H_out = params["meta"][0].shape[0]
    d_i = C // intro_heads
    d_m = C // mem_heads
    scale_i = 1.0 / math.sqrt(d_i)
    scale_m = 1.0 / math.sqrt(d_m)
    if approx_recip is None:
        approx_recip = (param_dtype != jnp.float32)

    def t(wb):
        w, b = wb
        return w.T.astype(jnp.float32), b.reshape(1, -1).astype(jnp.float32)

    w_sm, b_sm = t(params["self_model"])
    wq, bq = t(params["intro_q"])
    wk, bk = t(params["intro_k"])
    wv, bv = t(params["intro_v"])
    w_qkv = jnp.concatenate([wq * scale_i, wk, wv], axis=1)          # [C, 3C]
    b_qkv = jnp.concatenate([bq * scale_i, bk, bv], axis=1)          # [1, 3C]
    w_io, b_io = t(params["intro_o"])

    w_mq, b_mq = t(params["mem_q"])
    w_mq, b_mq = w_mq * scale_m, b_mq * scale_m
    w_mo, b_mo = t(params["mem_o"])

    # meta-cognition weight padded to a lane-dense (multiple of 128) output width
    w_meta, b_meta = t(params["meta"])
    h_pad = ((H_out + LANES - 1) // LANES) * LANES
    w_meta_p = jnp.zeros((C, h_pad), jnp.float32).at[:, :H_out].set(w_meta)
    b_meta_p = jnp.zeros((1, h_pad), jnp.float32).at[:, :H_out].set(b_meta)

    # emotion classifier lane-padded to 128 (padded lanes get -1e30 bias -> prob 0)
    we, be = t(params["emotion_cls"])                                # [C, 10], [1, 10]
    n_emo = we.shape[1]
    w_emo = jnp.zeros((C, LANES), jnp.float32).at[:, :n_emo].set(we)
    b_emo = jnp.full((1, LANES), -1e30, jnp.float32).at[:, :n_emo].set(be)

    # cached K/V projection of the (padded) reflection memory via fused [C,2C] matmul
    # (done once in f32, K cached pre-transposed, results cast to param_dtype)
    wmk, bmk = t(params["mem_k"])
    wmv, bmv = t(params["mem_v"])
    w_kv = jnp.concatenate([wmk, wmv], axis=1)                       # [C, 2C]
    b_kv = jnp.concatenate([bmk, bmv], axis=1)                       # [1, 2C]
    mem = params["reflection_memory"].astype(jnp.float32)
    m_valid = mem.shape[0]
    mem_padded = jnp.zeros((mem_pad, C), jnp.float32).at[:m_valid].set(mem)
    mk, mv = _project_reflection_kv(mem_padded, w_kv, b_kv)
    mkT = mk.T                                                       # [C, Mpad] one-time XLA transpose

    # additive mask bias for padded memory rows (0 valid, -1e30 pad)
    mem_bias = jnp.full((1, mem_pad), -1e30, jnp.float32).at[:, :m_valid].set(0.0)

    pd = param_dtype
    prep = {
        "w_sm": w_sm.astype(pd), "b_sm": b_sm,
        "w_qkv": w_qkv.astype(pd), "b_qkv": b_qkv,
        "w_io": w_io.astype(pd), "b_io": b_io,
        "mkT": mkT.astype(pd), "mv": mv.astype(pd), "mem_bias": mem_bias,
        "w_mq": w_mq.astype(pd), "b_mq": b_mq,
        "w_mo": w_mo.astype(pd), "b_mo": b_mo,
        "w_emo": w_emo.astype(pd), "b_emo": b_emo,
        "w_meta": w_meta_p.astype(pd), "b_meta": b_meta_p,
    }
    statics = {"intro_heads": intro_heads, "mem_heads": mem_heads,
               "n_emotions": n_emo, "approx_recip": bool(approx_recip)}
    return prep, statics


# ---------------------------------- forward ------------------------------------

def consciousness_forward(prep, statics, hidden_states, step=0):
    out, _emo_probs, self_aw, focus, depth, emo_idx = forward_device(
        hidden_states, prep, **statics)
    # TODO(synk): the torch .item()/.tolist() host scalar extraction has no kernel
    # equivalent; done as ONE batched device->host transfer instead of 4 syncs.
    self_aw_h, focus_h, depth_h, emo_h = jax.device_get(
        (self_aw, focus, depth, emo_idx))
    consciousness_data = {
        "self_awareness_level": float(self_aw_h),
        "attention_focus": float(focus_h),
        "emotional_state": [int(i) for i in emo_h],
        "introspection_depth": float(depth_h),
        "step": step,
    }
    return out, consciousness_data


# ----------------------- pure-JAX reference (for check) ------------------------

def reference_forward(params, hidden_states, intro_heads, mem_heads):
    def lin(x, wb):
        w, b = wb
        return x @ w.T + b

    B, S, H = hidden_states.shape
    C = params["self_model"][0].shape[0]

    def mha(q_in, kv_in, heads, pq, pk, pv, po):
        d = C // heads
        q, k, v = lin(q_in, pq), lin(kv_in, pk), lin(kv_in, pv)
        Bq, Sq, _ = q.shape
        Bk, Sk, _ = k.shape
        q = q.reshape(Bq, Sq, heads, d).transpose(0, 2, 1, 3)
        k = k.reshape(Bk, Sk, heads, d).transpose(0, 2, 1, 3)
        v = v.reshape(Bk, Sk, heads, d).transpose(0, 2, 1, 3)
        s = jnp.einsum("bhqd,bhkd->bhqk", q, k) / math.sqrt(d)
        p = jax.nn.softmax(s, axis=-1)
        o = jnp.einsum("bhqk,bhkd->bhqd", p, v).transpose(0, 2, 1, 3).reshape(Bq, Sq, C)
        return lin(o, po), p.mean(axis=1)

    self_repr = lin(hidden_states, params["self_model"])
    introspected, attn_w = mha(self_repr, self_repr, intro_heads,
                               params["intro_q"], params["intro_k"],
                               params["intro_v"], params["intro_o"])
    mem = jnp.broadcast_to(params["reflection_memory"][None],
                           (B,) + params["reflection_memory"].shape)
    memory_context, _ = mha(introspected, mem, mem_heads,
                            params["mem_q"], params["mem_k"],
                            params["mem_v"], params["mem_o"])
    emotion_logits = lin(introspected.mean(axis=1), params["emotion_cls"])
    current_emotion = jax.nn.softmax(emotion_logits, axis=-1)
    out = lin(memory_context + introspected, params["meta"])
    data = {
        "self_awareness_level": float(jax.nn.sigmoid(jnp.mean(self_repr))),
        "attention_focus": float(jnp.mean(jnp.max(attn_w, axis=-1))),
        "emotional_state": [int(i) for i in jnp.argmax(current_emotion, axis=-1)],
        "introspection_depth": float(jnp.mean(jnp.linalg.norm(introspected, axis=-1))),
    }
    return out, current_emotion, data


# ------------------------------------ main --------------------------------------

if __name__ == "__main__":
    B, S, H, C = 2, 8, 32, 128
    intro_heads = min(16, max(1, C // 64))
    while C % intro_heads != 0:
        intro_heads -= 1
    mem_heads = min(8, max(1, C // 64))
    while C % mem_heads != 0:
        mem_heads -= 1

    key = jax.random.PRNGKey(0)
    pkey, xkey = jax.random.split(key)
    params = init_params(pkey, H, C)
    x = jax.random.normal(xkey, (B, S, H), jnp.float32)

    ref_out, ref_emotion, ref_data = reference_forward(params, x, intro_heads, mem_heads)
    scalar_names = ("self_awareness_level", "attention_focus", "introspection_depth")

    # ---- exact f32 path: tight numerical check ----
    prep32, st32 = prepare_params(params, intro_heads, mem_heads,
                                  param_dtype=jnp.float32)
    out32, data32 = consciousness_forward(prep32, st32, x, step=0)
    out32 = jax.block_until_ready(out32)
    assert out32.shape == (B, S, H) and out32.dtype == jnp.float32
    assert jnp.allclose(out32, ref_out, atol=5e-4, rtol=5e-4), \
        float(jnp.max(jnp.abs(out32 - ref_out)))
    assert data32["emotional_state"] == ref_data["emotional_state"]
    for name in scalar_names:
        assert abs(data32[name] - ref_data[name]) < 1e-3, \
            (name, data32[name], ref_data[name])

    # ---- bf16 production path (halved HBM weight/KV bytes, approx reciprocal):
    #      loose tolerance per the perf review ----
    prep16, st16 = prepare_params(params, intro_heads, mem_heads,
                                  param_dtype=jnp.bfloat16)
    out16, data16 = consciousness_forward(prep16, st16, x, step=0)
    out16 = jax.block_until_ready(out16)
    assert out16.shape == (B, S, H)
    assert jnp.allclose(out16, ref_out, atol=5e-2, rtol=5e-2), \
        float(jnp.max(jnp.abs(out16 - ref_out)))
    for name in scalar_names:
        tol = 3e-2 * (1.0 + abs(ref_data[name]))
        assert abs(data16[name] - ref_data[name]) < tol, \
            (name, data16[name], ref_data[name])

    print("KERNEL_OK")
</pallas_src>

<mosaic_0001>
module attributes {stable_mosaic.version = 11 : i64} {
  func.func @_kv_prep_kernel(%arg0: memref<1024x128xf32, #tpu.memory_space<vmem>>, %arg1: memref<128x256xf32, #tpu.memory_space<vmem>>, %arg2: memref<1x256xf32, #tpu.memory_space<vmem>>, %arg3: memref<1024x128xf32, #tpu.memory_space<vmem>>, %arg4: memref<1024x128xf32, #tpu.memory_space<vmem>>) attributes {dimension_semantics = [], scalar_prefetch = 0 : i64, scratch_operands = 0 : i64, tpu.core_type = #tpu.core_type<tc>} {
    %c0 = arith.constant 0 : index
    %c0_0 = arith.constant 0 : index
    %0 = vector.load %arg0[%c0, %c0_0] : memref<1024x128xf32, #tpu.memory_space<vmem>>, vector<1024x128xf32>
    %c0_1 = arith.constant 0 : index
    %c0_2 = arith.constant 0 : index
    %1 = vector.load %arg1[%c0_1, %c0_2] : memref<128x256xf32, #tpu.memory_space<vmem>>, vector<128x256xf32>
    %cst = arith.constant dense<0.000000e+00> : vector<1024x256xf32>
    %2 = tpu.matmul %0, %1, %cst {dimension_numbers = #tpu.dot_dimension_numbers<[1], [0], [0], [1], [0, 0, 1, 1], [], []>} : vector<1024x128xf32>, vector<128x256xf32>, vector<1024x256xf32> -> vector<1024x256xf32>
    %c0_3 = arith.constant 0 : index
    %c0_4 = arith.constant 0 : index
    %3 = vector.load %arg2[%c0_3, %c0_4] : memref<1x256xf32, #tpu.memory_space<vmem>>, vector<1x256xf32>
    %4 = vector.broadcast %3 : vector<1x256xf32> to vector<1024x256xf32>
    %5 = arith.addf %2, %4 : vector<1024x256xf32>
    %6 = vector.extract_strided_slice %5 {offsets = [0, 0], sizes = [1024, 128], strides = [1, 1]} : vector<1024x256xf32> to vector<1024x128xf32>
    %c0_5 = arith.constant 0 : index
    %c0_6 = arith.constant 0 : index
    %7 = vector.load %arg3[%c0_5, %c0_6] : memref<1024x128xf32, #tpu.memory_space<vmem>>, vector<1024x128xf32>
    tpu.vector_store %arg3[%c0_5, %c0_6], %6 {strides = array<i32>} : memref<1024x128xf32, #tpu.memory_space<vmem>>, vector<1024x128xf32>,
    %8 = vector.extract_strided_slice %5 {offsets = [0, 128], sizes = [1024, 128], strides = [1, 1]} : vector<1024x256xf32> to vector<1024x128xf32>
    %c0_7 = arith.constant 0 : index
    %c0_8 = arith.constant 0 : index
    %9 = vector.load %arg4[%c0_7, %c0_8] : memref<1024x128xf32, #tpu.memory_space<vmem>>, vector<1024x128xf32>
    tpu.vector_store %arg4[%c0_7, %c0_8], %8 {strides = array<i32>} : memref<1024x128xf32, #tpu.memory_space<vmem>>, vector<1024x128xf32>,
    return
  }
}

</mosaic_0001>

<llo_original>
// kernel: tpu_custom_call.1
$region0: #{tpu_custom_call.1}
  #allocation0 [shape = 'u32[]', space=smem, size = 0x4, offset = 0x4, fixed_abs, tag = 'smem constant byte address 0x4 - core index']
  #allocation1 [shape = 'u32[144,128]{1,0:T(1,128)}', space=vmem, size = 0x12000, scoped, tag = 'internal scratch']
  %s0 = inlined_call_operand.hbm [shape: f32[1024,128], index: 0, kind: input, shape index: {}]
  %s1 = inlined_call_operand.hbm [shape: f32[128,256], index: 1, kind: input, shape index: {}]
  %s2 = inlined_call_operand.vmem [shape: f32[1,256], index: 2, kind: input, shape index: {}]
  %s3 = inlined_call_operand.hbm [shape: f32[1024,128], index: 3, kind: output, shape index: {0}]
  %s4 = inlined_call_operand.hbm [shape: f32[1024,128], index: 4, kind: output, shape index: {1}]
  %5 = xla_tuple %s3, %s4
  %s6 = sld [smem:[#allocation0]]
  $region38: #{tpu_custom_call.1} parent=0
    _
  %s8 = ssub.s32 1, %s6
  %s9 = scalar_select 0, %s8, %s6
  $region1: #{tpu_custom_call.1} parent=0
    #allocation2 [shape = 'u8[524288]{0}', space=vmem, size = 0x80000, scoped, tag = 'input window, operand 0, single buffered']
    #allocation3 [shape = 's32[1]{0}', space=sflag, size = 0x4, scoped, tag = 'scoped memory for tpu_custom_call.1']
    #allocation4 [shape = 's32[1]{0}', space=sflag, size = 0x4, scoped, tag = 'scoped memory for tpu_custom_call.1']
    #allocation5 [shape = 'u8[131072]{0}', space=vmem, size = 0x20000, scoped, tag = 'input window, operand 1, single buffered']
    #allocation6 [shape = 's32[1]{0}', space=sflag, size = 0x4, scoped, tag = 'scoped memory for tpu_custom_call.1']
    #allocation7 [shape = 'u8[524288]{0}', space=vmem, size = 0x80000, scoped, tag = 'output window, operand 0, single buffered']
    #allocation8 [shape = 'u8[524288]{0}', space=vmem, size = 0x80000, scoped, tag = 'output window, operand 1, single buffered']
    #allocation9 [shape = 's32[1]{0}', space=sflag, size = 0x4, scoped, tag = 'scoped memory for tpu_custom_call.1']
    %10 = vsyncpa [#allocation3], 0
    %11 = vsyncpa [#allocation6], 0
    %12 = vsyncpa [#allocation4], 0
    %13 = vsyncpa [#allocation9], 0
    // Predicated region
    $region2: #{tpu_custom_call.1} parent=1 // pred_check
      _
    $region3: #{tpu_custom_call.1} parent=1 // pred_check_branch
      %15 = sbr.rel (0) target = $region5
    $region4: #{tpu_custom_call.1} parent=1 // pred_region
      %s17 = ssub.s32 16384, 16384
      %18 = vsyncadd [#allocation3], %s17
      %s19 = sshll.u32 [#allocation2], 4
      %s20 = int_to_ptr.vmem [resolvable:$true] %s19
      %25 = dma.hbm_to_vmem [thread:$0]  %s0, 16384, %s20, [#allocation3], 128, 128, 8
    $region5: #{tpu_custom_call.1} parent=1 // pred_fallthru
      _
    // Predicated region
    $region6: #{tpu_custom_call.1} parent=1 // pred_check
      _
    $region7: #{tpu_custom_call.1} parent=1 // pred_check_branch
      %27 = sbr.rel (0) target = $region9
    $region8: #{tpu_custom_call.1} parent=1 // pred_region
      %s29 = ssub.s32 4096, 4096
      %30 = vsyncadd [#allocation6], %s29
      %s31 = sshll.u32 [#allocation5], 4
      %s32 = int_to_ptr.vmem [resolvable:$true] %s31
      %37 = dma.hbm_to_vmem [thread:$0]  %s1, 4096, %s32, [#allocation6], 256, 256, 16
    $region9: #{tpu_custom_call.1} parent=1 // pred_fallthru
      _
    // Predicated region
    $region10: #{tpu_custom_call.1} parent=1 // pred_check
      _
    $region11: #{tpu_custom_call.1} parent=1 // pred_check_branch
      %39 = sbr.rel (0) target = $region13
    $region12: #{tpu_custom_call.1} parent=1 // pred_region
      _
    $region13: #{tpu_custom_call.1} parent=1 // pred_fallthru
      _
    // Predicated region
    $region14: #{tpu_custom_call.1} parent=1 // pred_check
      _
    $region15: #{tpu_custom_call.1} parent=1 // pred_check_branch
      %41 = sbr.rel (0) target = $region17
    $region16: #{tpu_custom_call.1} parent=1 // pred_region
      %42 = dma.done [#allocation3], 16384
    $region17: #{tpu_custom_call.1} parent=1 // pred_fallthru
      _
    // Predicated region
    $region18: #{tpu_custom_call.1} parent=1 // pred_check
      _
    $region19: #{tpu_custom_call.1} parent=1 // pred_check_branch
      %44 = sbr.rel (0) target = $region21
    $region20: #{tpu_custom_call.1} parent=1 // pred_region
      %45 = dma.done [#allocation6], 4096
    $region21: #{tpu_custom_call.1} parent=1 // pred_fallthru
      _
    %v46 = vld [vmem:[#allocation2] sm:$0xff]
    %v47 = vld [vmem:[#allocation2 + $0x8] sm:$0xff]
    %v48 = vld [vmem:[#allocation2 + $0x10] sm:$0xff]
    %v49 = vld [vmem:[#allocation2 + $0x18] sm:$0xff]
    %v50 = vld [vmem:[#allocation2 + $0x20] sm:$0xff]
    %v51 = vld [vmem:[#allocation2 + $0x28] sm:$0xff]
    %v52 = vld [vmem:[#allocation2 + $0x30] sm:$0xff]
    %v53 = vld [vmem:[#allocation2 + $0x38] sm:$0xff]
    %v54 = vld [vmem:[#allocation2 + $0x40] sm:$0xff]
    %v55 = vld [vmem:[#allocation2 + $0x48] sm:$0xff]
    %v56 = vld [vmem:[#allocation2 + $0x50] sm:$0xff]
    %v57 = vld [vmem:[#allocation2 + $0x58] sm:$0xff]
    %v58 = vld [vmem:[#allocation2 + $0x60] sm:$0xff]
    %v59 = vld [vmem:[#allocation2 + $0x68] sm:$0xff]
    %v60 = vld [vmem:[#allocation2 + $0x70] sm:$0xff]
    %v61 = vld [vmem:[#allocation2 + $0x78] sm:$0xff]
    %v62 = vld [vmem:[#allocation2 + $0x80] sm:$0xff]
    %v63 = vld [vmem:[#allocation2 + $0x88] sm:$0xff]
    %v64 = vld [vmem:[#allocation2 + $0x90] sm:$0xff]
    %v65 = vld [vmem:[#allocation2 + $0x98] sm:$0xff]
    %v66 = vld [vmem:[#allocation2 + $0xa0] sm:$0xff]
    %v67 = vld [vmem:[#allocation2 + $0xa8] sm:$0xff]
    %v68 = vld [vmem:[#allocation2 + $0xb0] sm:$0xff]
    %v69 = vld [vmem:[#allocation2 + $0xb8] sm:$0xff]
    %v70 = vld [vmem:[#allocation2 + $0xc0] sm:$0xff]
    %v71 = vld [vmem:[#allocation2 + $0xc8] sm:$0xff]
    %v72 = vld [vmem:[#allocation2 + $0xd0] sm:$0xff]
    %v73 = vld [vmem:[#allocation2 + $0xd8] sm:$0xff]
    %v74 = vld [vmem:[#allocation2 + $0xe0] sm:$0xff]
    %v75 = vld [vmem:[#allocation2 + $0xe8] sm:$0xff]
    %v76 = vld [vmem:[#allocation2 + $0xf0] sm:$0xff]
    %v77 = vld [vmem:[#allocation2 + $0xf8] sm:$0xff]
    %v78 = vld [vmem:[#allocation2 + $0x100] sm:$0xff]
    %v79 = vld [vmem:[#allocation2 + $0x108] sm:$0xff]
    %v80 = vld [vmem:[#allocation2 + $0x110] sm:$0xff]
    %v81 = vld [vmem:[#allocation2 + $0x118] sm:$0xff]
    %v82 = vld [vmem:[#allocation2 + $0x120] sm:$0xff]
    %v83 = vld [vmem:[#allocation2 + $0x128] sm:$0xff]
    %v84 = vld [vmem:[#allocation2 + $0x130] sm:$0xff]
    %v85 = vld [vmem:[#allocation2 + $0x138] sm:$0xff]
    %v86 = vld [vmem:[#allocation2 + $0x140] sm:$0xff]
    %v87 = vld [vmem:[#allocation2 + $0x148] sm:$0xff]
    %v88 = vld [vmem:[#allocation2 + $0x150] sm:$0xff]
    %v89 = vld [vmem:[#allocation2 + $0x158] sm:$0xff]
    %v90 = vld [vmem:[#allocation2 + $0x160] sm:$0xff]
    %v91 = vld [vmem:[#allocation2 + $0x168] sm:$0xff]
    %v92 = vld [vmem:[#allocation2 + $0x170] sm:$0xff]
    %v93 = vld [vmem:[#allocation2 + $0x178] sm:$0xff]
    %v94 = vld [vmem:[#allocation2 + $0x180] sm:$0xff]
    %v95 = vld [vmem:[#allocation2 + $0x188] sm:$0xff]
    %v96 = vld [vmem:[#allocation2 + $0x190] sm:$0xff]
    %v97 = vld [vmem:[#allocation2 + $0x198] sm:$0xff]
    %v98 = vld [vmem:[#allocation2 + $0x1a0] sm:$0xff]
    %v99 = vld [vmem:[#allocation2 + $0x1a8] sm:$0xff]
    %v100 = vld [vmem:[#allocation2 + $0x1b0] sm:$0xff]
    %v101 = vld [vmem:[#allocation2 + $0x1b8] sm:$0xff]
    %v102 = vld [vmem:[#allocation2 + $0x1c0] sm:$0xff]
    %v103 = vld [vmem:[#allocation2 + $0x1c8] sm:$0xff]
    %v104 = vld [vmem:[#allocation2 + $0x1d0] sm:$0xff]
    %v105 = vld [vmem:[#allocation2 + $0x1d8] sm:$0xff]
    %v106 = vld [vmem:[#allocation2 + $0x1e0] sm:$0xff]
    %v107 = vld [vmem:[#allocation2 + $0x1e8] sm:$0xff]
    %v108 = vld [vmem:[#allocation2 + $0x1f0] sm:$0xff]
    %v109 = vld [vmem:[#allocation2 + $0x1f8] sm:$0xff]
    %v110 = vld [vmem:[#allocation2 + $0x200] sm:$0xff]
    %v111 = vld [vmem:[#allocation2 + $0x208] sm:$0xff]
    %v112 = vld [vmem:[#allocation2 + $0x210] sm:$0xff]
    %v113 = vld [vmem:[#allocation2 + $0x218] sm:$0xff]
    %v114 = vld [vmem:[#allocation2 + $0x220] sm:$0xff]
    %v115 = vld [vmem:[#allocation2 + $0x228] sm:$0xff]
    %v116 = vld [vmem:[#allocation2 + $0x230] sm:$0xff]
    %v117 = vld [vmem:[#allocation2 + $0x238] sm:$0xff]
    %v118 = vld [vmem:[#allocation2 + $0x240] sm:$0xff]
    %v119 = vld [vmem:[#allocation2 + $0x248] sm:$0xff]
    %v120 = vld [vmem:[#allocation2 + $0x250] sm:$0xff]
    %v121 = vld [vmem:[#allocation2 + $0x258] sm:$0xff]
    %v122 = vld [vmem:[#allocation2 + $0x260] sm:$0xff]
    %v123 = vld [vmem:[#allocation2 + $0x268] sm:$0xff]
    %v124 = vld [vmem:[#allocation2 + $0x270] sm:$0xff]
    %v125 = vld [vmem:[#allocation2 + $0x278] sm:$0xff]
    %v126 = vld [vmem:[#allocation2 + $0x280] sm:$0xff]
    %v127 = vld [vmem:[#allocation2 + $0x288] sm:$0xff]
    %v128 = vld [vmem:[#allocation2 + $0x290] sm:$0xff]
    %v129 = vld [vmem:[#allocation2 + $0x298] sm:$0xff]
    %v130 = vld [vmem:[#allocation2 + $0x2a0] sm:$0xff]
    %v131 = vld [vmem:[#allocation2 + $0x2a8] sm:$0xff]
    %v132 = vld [vmem:[#allocation2 + $0x2b0] sm:$0xff]
    %v133 = vld [vmem:[#allocation2 + $0x2b8] sm:$0xff]
    %v134 = vld [vmem:[#allocation2 + $0x2c0] sm:$0xff]
    %v135 = vld [vmem:[#allocation2 + $0x2c8] sm:$0xff]
    %v136 = vld [vmem:[#allocation2 + $0x2d0] sm:$0xff]
    %v137 = vld [vmem:[#allocation2 + $0x2d8] sm:$0xff]
    %v138 = vld [vmem:[#allocation2 + $0x2e0] sm:$0xff]
    %v139 = vld [vmem:[#allocation2 + $0x2e8] sm:$0xff]
    %v140 = vld [vmem:[#allocation2 + $0x2f0] sm:$0xff]
    %v141 = vld [vmem:[#allocation2 + $0x2f8] sm:$0xff]
    %v142 = vld [vmem:[#allocation2 + $0x300] sm:$0xff]
    %v143 = vld [vmem:[#allocation2 + $0x308] sm:$0xff]
    %v144 = vld [vmem:[#allocation2 + $0x310] sm:$0xff]
    %v145 = vld [vmem:[#allocation2 + $0x318] sm:$0xff]
    %v146 = vld [vmem:[#allocation2 + $0x320] sm:$0xff]
    %v147 = vld [vmem:[#allocation2 + $0x328] sm:$0xff]
    %v148 = vld [vmem:[#allocation2 + $0x330] sm:$0xff]
    %v149 = vld [vmem:[#allocation2 + $0x338] sm:$0xff]
    %v150 = vld [vmem:[#allocation2 + $0x340] sm:$0xff]
    %v151 = vld [vmem:[#allocation2 + $0x348] sm:$0xff]
    %v152 = vld [vmem:[#allocation2 + $0x350] sm:$0xff]
    %v153 = vld [vmem:[#allocation2 + $0x358] sm:$0xff]
    %v154 = vld [vmem:[#allocation2 + $0x360] sm:$0xff]
    %v155 = vld [vmem:[#allocation2 + $0x368] sm:$0xff]
    %v156 = vld [vmem:[#allocation2 + $0x370] sm:$0xff]
    %v157 = vld [vmem:[#allocation2 + $0x378] sm:$0xff]
    %v158 = vld [vmem:[#allocation2 + $0x380] sm:$0xff]
    %v159 = vld [vmem:[#allocation2 + $0x388] sm:$0xff]
    %v160 = vld [vmem:[#allocation2 + $0x390] sm:$0xff]
    %v161 = vld [vmem:[#allocation2 + $0x398] sm:$0xff]
    %v162 = vld [vmem:[#allocation2 + $0x3a0] sm:$0xff]
    %v163 = vld [vmem:[#allocation2 + $0x3a8] sm:$0xff]
    %v164 = vld [vmem:[#allocation2 + $0x3b0] sm:$0xff]
    %v165 = vld [vmem:[#allocation2 + $0x3b8] sm:$0xff]
    %v166 = vld [vmem:[#allocation2 + $0x3c0] sm:$0xff]
    %v167 = vld [vmem:[#allocation2 + $0x3c8] sm:$0xff]
    %v168 = vld [vmem:[#allocation2 + $0x3d0] sm:$0xff]
    %v169 = vld [vmem:[#allocation2 + $0x3d8] sm:$0xff]
    %v170 = vld [vmem:[#allocation2 + $0x3e0] sm:$0xff]
    %v171 = vld [vmem:[#allocation2 + $0x3e8] sm:$0xff]
    %v172 = vld [vmem:[#allocation2 + $0x3f0] sm:$0xff]
    %v173 = vld [vmem:[#allocation2 + $0x3f8] sm:$0xff]
    %v174 = vld [vmem:[#allocation5] sm:$0xff]
    %v175 = vld [vmem:[#allocation5 + $0x8] sm:$0xff]
    %v176 = vld [vmem:[#allocation5 + $0x10] sm:$0xff]
    %v177 = vld [vmem:[#allocation5 + $0x18] sm:$0xff]
    %v178 = vld [vmem:[#allocation5 + $0x20] sm:$0xff]
    %v179 = vld [vmem:[#allocation5 + $0x28] sm:$0xff]
    %v180 = vld [vmem:[#allocation5 + $0x30] sm:$0xff]
    %v181 = vld [vmem:[#allocation5 + $0x38] sm:$0xff]
    %v182 = vld [vmem:[#allocation5 + $0x40] sm:$0xff]
    %v183 = vld [vmem:[#allocation5 + $0x48] sm:$0xff]
    %v184 = vld [vmem:[#allocation5 + $0x50] sm:$0xff]
    %v185 = vld [vmem:[#allocation5 + $0x58] sm:$0xff]
    %v186 = vld [vmem:[#allocation5 + $0x60] sm:$0xff]
    %v187 = vld [vmem:[#allocation5 + $0x68] sm:$0xff]
    %v188 = vld [vmem:[#allocation5 + $0x70] sm:$0xff]
    %v189 = vld [vmem:[#allocation5 + $0x78] sm:$0xff]
    %v190 = vld [vmem:[#allocation5 + $0x80] sm:$0xff]
    %v191 = vld [vmem:[#allocation5 + $0x88] sm:$0xff]
    %v192 = vld [vmem:[#allocation5 + $0x90] sm:$0xff]
    %v193 = vld [vmem:[#allocation5 + $0x98] sm:$0xff]
    %v194 = vld [vmem:[#allocation5 + $0xa0] sm:$0xff]
    %v195 = vld [vmem:[#allocation5 + $0xa8] sm:$0xff]
    %v196 = vld [vmem:[#allocation5 + $0xb0] sm:$0xff]
    %v197 = vld [vmem:[#allocation5 + $0xb8] sm:$0xff]
    %v198 = vld [vmem:[#allocation5 + $0xc0] sm:$0xff]
    %v199 = vld [vmem:[#allocation5 + $0xc8] sm:$0xff]
    %v200 = vld [vmem:[#allocation5 + $0xd0] sm:$0xff]
    %v201 = vld [vmem:[#allocation5 + $0xd8] sm:$0xff]
    %v202 = vld [vmem:[#allocation5 + $0xe0] sm:$0xff]
    %v203 = vld [vmem:[#allocation5 + $0xe8] sm:$0xff]
    %v204 = vld [vmem:[#allocation5 + $0xf0] sm:$0xff]
    %v205 = vld [vmem:[#allocation5 + $0xf8] sm:$0xff]
    %v206 = vld [vmem:[%s2] sm:$0x3]
    %v208 = vlaneseq
    %v209 = vshrl.u32 %v208, 7
    %v210 = vsub.s32 0, %v209
    %v211 = vrot.slane %v206, %v210
    %v212 = vlaneseq
    %v213 = vshrl.u32 %v212, 7
    %v214 = vsub.s32 1, %v213
    %v215 = vrot.slane %v206, %v214
    %218 = vmatprep.subr.mxu0 %v205
    %219 = vmatpush1.msra.mxu0 %v204
    %220 = vmatprep.subr.mxu0 %v203
    %221 = vmatpush1.msra.mxu0 %v202
    %222 = vmatprep.subr.mxu0 %v201
    %223 = vmatpush1.msra.mxu0 %v200
    %224 = vmatprep.subr.mxu0 %v199
    %225 = vmatpush1.msra.mxu0 %v198
    %226 = vmatprep.subr.mxu0 %v197
    %227 = vmatpush1.msra.mxu0 %v196
    %228 = vmatprep.subr.mxu0 %v195
    %229 = vmatpush1.msra.mxu0 %v194
    %230 = vmatprep.subr.mxu0 %v193
    %231 = vmatpush1.msra.mxu0 %v192
    %232 = vmatprep.subr.mxu0 %v191
    %233 = vmatpush1.msra.mxu0 %v190
    %234 = vmatprep.subr.mxu0 %v189
    %235 = vmatpush1.msra.mxu0 %v188
    %236 = vmatprep.subr.mxu0 %v187
    %237 = vmatpush1.msra.mxu0 %v186
    %238 = vmatprep.subr.mxu0 %v185
    %239 = vmatpush1.msra.mxu0 %v184
    %240 = vmatprep.subr.mxu0 %v183
    %241 = vmatpush1.msra.mxu0 %v182
    %242 = vmatprep.subr.mxu0 %v181
    %243 = vmatpush1.msra.mxu0 %v180
    %244 = vmatprep.subr.mxu0 %v179
    %245 = vmatpush1.msra.mxu0 %v178
    %246 = vmatprep.subr.mxu0 %v177
    %247 = vmatpush1.msra.mxu0 %v176
    %248 = vmatprep.subr.mxu0 %v175
    %249 = vmatpush1.msra.mxu0 %v174
    %250 = vmatprep.subr.mxu0 0.0
    %251 = vmatpush2.msra.mxu0 0.0
    %252 = vmatprep.subr.mxu0 0.0
    %253 = vmatpush2.msra.mxu0 0.0
    %254 = vmatprep.subr.mxu0 0.0
    %255 = vmatpush2.msra.mxu0 0.0
    %256 = vmatprep.subr.mxu0 0.0
    %257 = vmatpush2.msra.mxu0 0.0
    %258 = vmatprep.subr.mxu0 0.0
    %259 = vmatpush2.msra.mxu0 0.0
    %260 = vmatprep.subr.mxu0 0.0
    %261 = vmatpush2.msra.mxu0 0.0
    %262 = vmatprep.subr.mxu0 0.0
    %263 = vmatpush2.msra.mxu0 0.0
    %264 = vmatprep.subr.mxu0 0.0
    %265 = vmatpush2.msra.mxu0 0.0
    %266 = vmatprep.subr.mxu0 0.0
    %267 = vmatpush2.msra.mxu0 0.0
    %268 = vmatprep.subr.mxu0 0.0
    %269 = vmatpush2.msra.mxu0 0.0
    %270 = vmatprep.subr.mxu0 0.0
    %271 = vmatpush2.msra.mxu0 0.0
    %272 = vmatprep.subr.mxu0 0.0
    %273 = vmatpush2.msra.mxu0 0.0
    %274 = vmatprep.subr.mxu0 0.0
    %275 = vmatpush2.msra.mxu0 0.0
    %276 = vmatprep.subr.mxu0 0.0
    %277 = vmatpush2.msra.mxu0 0.0
    %278 = vmatprep.subr.mxu0 0.0
    %279 = vmatpush2.msra.mxu0 0.0
    %280 = vmatprep.subr.mxu0 0.0
    %281 = vmatpush2.msra.mxu0 0.0
    %282 = vmatprep.mubr.f32.mxu0 0.0
    %283 = vmatmul.mubr.f32.gmra.mxu0 %v46
    %v284 = vpop.f32.mrf.mxu0
    %v285 = vadd.f32 %v211, %v284
    %v286 = vpop.f32.mrf.mxu0
    %v287 = vadd.f32 %v215, %v286
    %288 = vmatprep.mubr.f32.mxu0 0.0
    %289 = vmatmul.mubr.f32.gmra.mxu0 %v47
    %v290 = vpop.f32.mrf.mxu0
    %v291 = vadd.f32 %v211, %v290
    %v292 = vpop.f32.mrf.mxu0
    %v293 = vadd.f32 %v215, %v292
    %294 = vmatprep.mubr.f32.mxu0 0.0
    %295 = vmatmul.mubr.f32.gmra.mxu0 %v48
    %v296 = vpop.f32.mrf.mxu0
    %v297 = vadd.f32 %v211, %v296
    %v298 = vpop.f32.mrf.mxu0
    %v299 = vadd.f32 %v215, %v298
    %300 = vmatprep.mubr.f32.mxu0 0.0
    %301 = vmatmul.mubr.f32.gmra.mxu0 %v49
    %v302 = vpop.f32.mrf.mxu0
    %v303 = vadd.f32 %v211, %v302
    %v304 = vpop.f32.mrf.mxu0
    %v305 = vadd.f32 %v215, %v304
    %306 = vmatprep.mubr.f32.mxu0 0.0
    %307 = vmatmul.mubr.f32.gmra.mxu0 %v50
    %v308 = vpop.f32.mrf.mxu0
    %v309 = vadd.f32 %v211, %v308
    %v310 = vpop.f32.mrf.mxu0
    %v311 = vadd.f32 %v215, %v310
    %312 = vmatprep.mubr.f32.mxu0 0.0
    %313 = vmatmul.mubr.f32.gmra.mxu0 %v51
    %v314 = vpop.f32.mrf.mxu0
    %v315 = vadd.f32 %v211, %v314
    %v316 = vpop.f32.mrf.mxu0
    %v317 = vadd.f32 %v215, %v316
    %318 = vmatprep.mubr.f32.mxu0 0.0
    %319 = vmatmul.mubr.f32.gmra.mxu0 %v52
    %v320 = vpop.f32.mrf.mxu0
    %v321 = vadd.f32 %v211, %v320
    %v322 = vpop.f32.mrf.mxu0
    %v323 = vadd.f32 %v215, %v322
    %324 = vmatprep.mubr.f32.mxu0 0.0
    %325 = vmatmul.mubr.f32.gmra.mxu0 %v53
    %v326 = vpop.f32.mrf.mxu0
    %v327 = vadd.f32 %v211, %v326
    %v328 = vpop.f32.mrf.mxu0
    %v329 = vadd.f32 %v215, %v328
    %330 = vmatprep.mubr.f32.mxu0 0.0
    %331 = vmatmul.mubr.f32.gmra.mxu0 %v54
    %v332 = vpop.f32.mrf.mxu0
    %v333 = vadd.f32 %v211, %v332
    %v334 = vpop.f32.mrf.mxu0
    %v335 = vadd.f32 %v215, %v334
    %336 = vmatprep.mubr.f32.mxu0 0.0
    %337 = vmatmul.mubr.f32.gmra.mxu0 %v55
    %v338 = vpop.f32.mrf.mxu0
    %v339 = vadd.f32 %v211, %v338
    %v340 = vpop.f32.mrf.mxu0
    %v341 = vadd.f32 %v215, %v340
    %342 = vmatprep.mubr.f32.mxu0 0.0
    %343 = vmatmul.mubr.f32.gmra.mxu0 %v56
    %v344 = vpop.f32.mrf.mxu0
    %v345 = vadd.f32 %v211, %v344
    %v346 = vpop.f32.mrf.mxu0
    %v347 = vadd.f32 %v215, %v346
    %348 = vmatprep.mubr.f32.mxu0 0.0
    %349 = vmatmul.mubr.f32.gmra.mxu0 %v57
    %v350 = vpop.f32.mrf.mxu0
    %v351 = vadd.f32 %v211, %v350
    %v352 = vpop.f32.mrf.mxu0
    %v353 = vadd.f32 %v215, %v352
    %354 = vmatprep.mubr.f32.mxu0 0.0
    %355 = vmatmul.mubr.f32.gmra.mxu0 %v58
    %v356 = vpop.f32.mrf.mxu0
    %v357 = vadd.f32 %v211, %v356
    %v358 = vpop.f32.mrf.mxu0
    %v359 = vadd.f32 %v215, %v358
    %360 = vmatprep.mubr.f32.mxu0 0.0
    %361 = vmatmul.mubr.f32.gmra.mxu0 %v59
    %v362 = vpop.f32.mrf.mxu0
    %v363 = vadd.f32 %v211, %v362
    %v364 = vpop.f32.mrf.mxu0
    %v365 = vadd.f32 %v215, %v364
    %366 = vmatprep.mubr.f32.mxu0 0.0
    %367 = vmatmul.mubr.f32.gmra.mxu0 %v60
    %v368 = vpop.f32.mrf.mxu0
    %v369 = vadd.f32 %v211, %v368
    %v370 = vpop.f32.mrf.mxu0
    %v371 = vadd.f32 %v215, %v370
    %372 = vmatprep.mubr.f32.mxu0 0.0
    %373 = vmatmul.mubr.f32.gmra.mxu0 %v61
    %v374 = vpop.f32.mrf.mxu0
    %v375 = vadd.f32 %v211, %v374
    %v376 = vpop.f32.mrf.mxu0
    %v377 = vadd.f32 %v215, %v376
    %378 = vmatprep.mubr.f32.mxu0 0.0
    %379 = vmatmul.mubr.f32.gmra.mxu0 %v62
    %v380 = vpop.f32.mrf.mxu0
    %v381 = vadd.f32 %v211, %v380
    %v382 = vpop.f32.mrf.mxu0
    %v383 = vadd.f32 %v215, %v382
    %384 = vmatprep.mubr.f32.mxu0 0.0
    %385 = vmatmul.mubr.f32.gmra.mxu0 %v63
    %v386 = vpop.f32.mrf.mxu0
    %v387 = vadd.f32 %v211, %v386
    %v388 = vpop.f32.mrf.mxu0
    %v389 = vadd.f32 %v215, %v388
    %390 = vmatprep.mubr.f32.mxu0 0.0
    %391 = vmatmul.mubr.f32.gmra.mxu0 %v64
    %v392 = vpop.f32.mrf.mxu0
    %v393 = vadd.f32 %v211, %v392
    %v394 = vpop.f32.mrf.mxu0
    %v395 = vadd.f32 %v215, %v394
    %396 = vmatprep.mubr.f32.mxu0 0.0
    %397 = vmatmul.mubr.f32.gmra.mxu0 %v65
    %v398 = vpop.f32.mrf.mxu0
    %v399 = vadd.f32 %v211, %v398
    %v400 = vpop.f32.mrf.mxu0
    %v401 = vadd.f32 %v215, %v400
    %402 = vmatprep.mubr.f32.mxu0 0.0
    %403 = vmatmul.mubr.f32.gmra.mxu0 %v66
    %v404 = vpop.f32.mrf.mxu0
    %v405 = vadd.f32 %v211, %v404
    %v406 = vpop.f32.mrf.mxu0
    %v407 = vadd.f32 %v215, %v406
    %408 = vmatprep.mubr.f32.mxu0 0.0
    %409 = vmatmul.mubr.f32.gmra.mxu0 %v67
    %v410 = vpop.f32.mrf.mxu0
    %v411 = vadd.f32 %v211, %v410
    %v412 = vpop.f32.mrf.mxu0
    %v413 = vadd.f32 %v215, %v412
    %414 = vmatprep.mubr.f32.mxu0 0.0
    %415 = vmatmul.mubr.f32.gmra.mxu0 %v68
    %v416 = vpop.f32.mrf.mxu0
    %v417 = vadd.f32 %v211, %v416
    %v418 = vpop.f32.mrf.mxu0
    %v419 = vadd.f32 %v215, %v418
    %420 = vmatprep.mubr.f32.mxu0 0.0
    %421 = vmatmul.mubr.f32.gmra.mxu0 %v69
    %v422 = vpop.f32.mrf.mxu0
    %v423 = vadd.f32 %v211, %v422
    %v424 = vpop.f32.mrf.mxu0
    %v425 = vadd.f32 %v215, %v424
    %426 = vmatprep.mubr.f32.mxu0 0.0
    %427 = vmatmul.mubr.f32.gmra.mxu0 %v70
    %v428 = vpop.f32.mrf.mxu0
    %v429 = vadd.f32 %v211, %v428
    %v430 = vpop.f32.mrf.mxu0
    %v431 = vadd.f32 %v215, %v430
    %432 = vmatprep.mubr.f32.mxu0 0.0
    %433 = vmatmul.mubr.f32.gmra.mxu0 %v71
    %v434 = vpop.f32.mrf.mxu0
    %v435 = vadd.f32 %v211, %v434
    %v436 = vpop.f32.mrf.mxu0
    %v437 = vadd.f32 %v215, %v436
    %438 = vmatprep.mubr.f32.mxu0 0.0
    %439 = vmatmul.mubr.f32.gmra.mxu0 %v72
    %v440 = vpop.f32.mrf.mxu0
    %v441 = vadd.f32 %v211, %v440
    %v442 = vpop.f32.mrf.mxu0
    %v443 = vadd.f32 %v215, %v442
    %444 = vmatprep.mubr.f32.mxu0 0.0
    %445 = vmatmul.mubr.f32.gmra.mxu0 %v73
    %v446 = vpop.f32.mrf.mxu0
    %v447 = vadd.f32 %v211, %v446
    %v448 = vpop.f32.mrf.mxu0
    %v449 = vadd.f32 %v215, %v448
    %450 = vmatprep.mubr.f32.mxu0 0.0
    %451 = vmatmul.mubr.f32.gmra.mxu0 %v74
    %v452 = vpop.f32.mrf.mxu0
    %v453 = vadd.f32 %v211, %v452
    %v454 = vpop.f32.mrf.mxu0
    %v455 = vadd.f32 %v215, %v454
    %456 = vmatprep.mubr.f32.mxu0 0.0
    %457 = vmatmul.mubr.f32.gmra.mxu0 %v75
    %v458 = vpop.f32.mrf.mxu0
    %v459 = vadd.f32 %v211, %v458
    %v460 = vpop.f32.mrf.mxu0
    %v461 = vadd.f32 %v215, %v460
    %462 = vmatprep.mubr.f32.mxu0 0.0
    %463 = vmatmul.mubr.f32.gmra.mxu0 %v76
    %v464 = vpop.f32.mrf.mxu0
    %v465 = vadd.f32 %v211, %v464
    %v466 = vpop.f32.mrf.mxu0
    %v467 = vadd.f32 %v215, %v466
    %468 = vmatprep.mubr.f32.mxu0 0.0
    %469 = vmatmul.mubr.f32.gmra.mxu0 %v77
    %v470 = vpop.f32.mrf.mxu0
    %v471 = vadd.f32 %v211, %v470
    %v472 = vpop.f32.mrf.mxu0
    %v473 = vadd.f32 %v215, %v472
    %474 = vmatprep.mubr.f32.mxu0 0.0
    %475 = vmatmul.mubr.f32.gmra.mxu0 %v78
    %v476 = vpop.f32.mrf.mxu0
    %v477 = vadd.f32 %v211, %v476
    %v478 = vpop.f32.mrf.mxu0
    %v479 = vadd.f32 %v215, %v478
    %480 = vmatprep.mubr.f32.mxu0 0.0
    %481 = vmatmul.mubr.f32.gmra.mxu0 %v79
    %v482 = vpop.f32.mrf.mxu0
    %v483 = vadd.f32 %v211, %v482
    %v484 = vpop.f32.mrf.mxu0
    %v485 = vadd.f32 %v215, %v484
    %486 = vmatprep.mubr.f32.mxu0 0.0
    %487 = vmatmul.mubr.f32.gmra.mxu0 %v80
    %v488 = vpop.f32.mrf.mxu0
    %v489 = vadd.f32 %v211, %v488
    %v490 = vpop.f32.mrf.mxu0
    %v491 = vadd.f32 %v215, %v490
    %492 = vmatprep.mubr.f32.mxu0 0.0
    %493 = vmatmul.mubr.f32.gmra.mxu0 %v81
    %v494 = vpop.f32.mrf.mxu0
    %v495 = vadd.f32 %v211, %v494
    %v496 = vpop.f32.mrf.mxu0
    %v497 = vadd.f32 %v215, %v496
    %498 = vmatprep.mubr.f32.mxu0 0.0
    %499 = vmatmul.mubr.f32.gmra.mxu0 %v82
    %v500 = vpop.f32.mrf.mxu0
    %v501 = vadd.f32 %v211, %v500
    %v502 = vpop.f32.mrf.mxu0
    %v503 = vadd.f32 %v215, %v502
    %504 = vmatprep.mubr.f32.mxu0 0.0
    %505 = vmatmul.mubr.f32.gmra.mxu0 %v83
    %v506 = vpop.f32.mrf.mxu0
    %v507 = vadd.f32 %v211, %v506
    %v508 = vpop.f32.mrf.mxu0
    %v509 = vadd.f32 %v215, %v508
    %510 = vmatprep.mubr.f32.mxu0 0.0
    %511 = vmatmul.mubr.f32.gmra.mxu0 %v84
    %v512 = vpop.f32.mrf.mxu0
    %v513 = vadd.f32 %v211, %v512
    %v514 = vpop.f32.mrf.mxu0
    %v515 = vadd.f32 %v215, %v514
    %516 = vmatprep.mubr.f32.mxu0 0.0
    %517 = vmatmul.mubr.f32.gmra.mxu0 %v85
    %v518 = vpop.f32.mrf.mxu0
    %v519 = vadd.f32 %v211, %v518
    %v520 = vpop.f32.mrf.mxu0
    %v521 = vadd.f32 %v215, %v520
    %522 = vmatprep.mubr.f32.mxu0 0.0
    %523 = vmatmul.mubr.f32.gmra.mxu0 %v86
    %v524 = vpop.f32.mrf.mxu0
    %v525 = vadd.f32 %v211, %v524
    %v526 = vpop.f32.mrf.mxu0
    %v527 = vadd.f32 %v215, %v526
    %528 = vmatprep.mubr.f32.mxu0 0.0
    %529 = vmatmul.mubr.f32.gmra.mxu0 %v87
    %v530 = vpop.f32.mrf.mxu0
    %v531 = vadd.f32 %v211, %v530
    %v532 = vpop.f32.mrf.mxu0
    %v533 = vadd.f32 %v215, %v532
    %534 = vmatprep.mubr.f32.mxu0 0.0
    %535 = vmatmul.mubr.f32.gmra.mxu0 %v88
    %v536 = vpop.f32.mrf.mxu0
    %v537 = vadd.f32 %v211, %v536
    %v538 = vpop.f32.mrf.mxu0
    %v539 = vadd.f32 %v215, %v538
    %540 = vmatprep.mubr.f32.mxu0 0.0
    %541 = vmatmul.mubr.f32.gmra.mxu0 %v89
    %v542 = vpop.f32.mrf.mxu0
    %v543 = vadd.f32 %v211, %v542
    %v544 = vpop.f32.mrf.mxu0
    %v545 = vadd.f32 %v215, %v544
    %546 = vmatprep.mubr.f32.mxu0 0.0
    %547 = vmatmul.mubr.f32.gmra.mxu0 %v90
    %v548 = vpop.f32.mrf.mxu0
    %v549 = vadd.f32 %v211, %v548
    %v550 = vpop.f32.mrf.mxu0
    %v551 = vadd.f32 %v215, %v550
    %552 = vmatprep.mubr.f32.mxu0 0.0
    %553 = vmatmul.mubr.f32.gmra.mxu0 %v91
    %v554 = vpop.f32.mrf.mxu0
    %v555 = vadd.f32 %v211, %v554
    %v556 = vpop.f32.mrf.mxu0
    %v557 = vadd.f32 %v215, %v556
    %558 = vmatprep.mubr.f32.mxu0 0.0
    %559 = vmatmul.mubr.f32.gmra.mxu0 %v92
    %v560 = vpop.f32.mrf.mxu0
    %v561 = vadd.f32 %v211, %v560
    %v562 = vpop.f32.mrf.mxu0
    %v563 = vadd.f32 %v215, %v562
    %564 = vmatprep.mubr.f32.mxu0 0.0
    %565 = vmatmul.mubr.f32.gmra.mxu0 %v93
    %v566 = vpop.f32.mrf.mxu0
    %v567 = vadd.f32 %v211, %v566
    %v568 = vpop.f32.mrf.mxu0
    %v569 = vadd.f32 %v215, %v568
    %570 = vmatprep.mubr.f32.mxu0 0.0
    %571 = vmatmul.mubr.f32.gmra.mxu0 %v94
    %v572 = vpop.f32.mrf.mxu0
    %v573 = vadd.f32 %v211, %v572
    %v574 = vpop.f32.mrf.mxu0
    %v575 = vadd.f32 %v215, %v574
    %576 = vmatprep.mubr.f32.mxu0 0.0
    %577 = vmatmul.mubr.f32.gmra.mxu0 %v95
    %v578 = vpop.f32.mrf.mxu0
    %v579 = vadd.f32 %v211, %v578
    %v580 = vpop.f32.mrf.mxu0
    %v581 = vadd.f32 %v215, %v580
    %582 = vmatprep.mubr.f32.mxu0 0.0
    %583 = vmatmul.mubr.f32.gmra.mxu0 %v96
    %v584 = vpop.f32.mrf.mxu0
    %v585 = vadd.f32 %v211, %v584
    %v586 = vpop.f32.mrf.mxu0
    %v587 = vadd.f32 %v215, %v586
    %588 = vmatprep.mubr.f32.mxu0 0.0
    %589 = vmatmul.mubr.f32.gmra.mxu0 %v97
    %v590 = vpop.f32.mrf.mxu0
    %v591 = vadd.f32 %v211, %v590
    %v592 = vpop.f32.mrf.mxu0
    %v593 = vadd.f32 %v215, %v592
    %594 = vmatprep.mubr.f32.mxu0 0.0
    %595 = vmatmul.mubr.f32.gmra.mxu0 %v98
    %v596 = vpop.f32.mrf.mxu0
    %v597 = vadd.f32 %v211, %v596
    %v598 = vpop.f32.mrf.mxu0
    %v599 = vadd.f32 %v215, %v598
    %600 = vmatprep.mubr.f32.mxu0 0.0
    %601 = vmatmul.mubr.f32.gmra.mxu0 %v99
    %v602 = vpop.f32.mrf.mxu0
    %v603 = vadd.f32 %v211, %v602
    %v604 = vpop.f32.mrf.mxu0
    %v605 = vadd.f32 %v215, %v604
    %606 = vmatprep.mubr.f32.mxu0 0.0
    %607 = vmatmul.mubr.f32.gmra.mxu0 %v100
    %v608 = vpop.f32.mrf.mxu0
    %v609 = vadd.f32 %v211, %v608
    %v610 = vpop.f32.mrf.mxu0
    %v611 = vadd.f32 %v215, %v610
    %612 = vmatprep.mubr.f32.mxu0 0.0
    %613 = vmatmul.mubr.f32.gmra.mxu0 %v101
    %v614 = vpop.f32.mrf.mxu0
    %v615 = vadd.f32 %v211, %v614
    %v616 = vpop.f32.mrf.mxu0
    %v617 = vadd.f32 %v215, %v616
    %618 = vmatprep.mubr.f32.mxu0 0.0
    %619 = vmatmul.mubr.f32.gmra.mxu0 %v102
    %v620 = vpop.f32.mrf.mxu0
    %v621 = vadd.f32 %v211, %v620
    %v622 = vpop.f32.mrf.mxu0
    %v623 = vadd.f32 %v215, %v622
    %624 = vmatprep.mubr.f32.mxu0 0.0
    %625 = vmatmul.mubr.f32.gmra.mxu0 %v103
    %v626 = vpop.f32.mrf.mxu0
    %v627 = vadd.f32 %v211, %v626
    %v628 = vpop.f32.mrf.mxu0
    %v629 = vadd.f32 %v215, %v628
    %630 = vmatprep.mubr.f32.mxu0 0.0
    %631 = vmatmul.mubr.f32.gmra.mxu0 %v104
    %v632 = vpop.f32.mrf.mxu0
    %v633 = vadd.f32 %v211, %v632
    %v634 = vpop.f32.mrf.mxu0
    %v635 = vadd.f32 %v215, %v634
    %636 = vmatprep.mubr.f32.mxu0 0.0
    %637 = vmatmul.mubr.f32.gmra.mxu0 %v105
    %v638 = vpop.f32.mrf.mxu0
    %v639 = vadd.f32 %v211, %v638
    %v640 = vpop.f32.mrf.mxu0
    %v641 = vadd.f32 %v215, %v640
    %642 = vmatprep.mubr.f32.mxu0 0.0
    %643 = vmatmul.mubr.f32.gmra.mxu0 %v106
    %v644 = vpop.f32.mrf.mxu0
    %v645 = vadd.f32 %v211, %v644
    %v646 = vpop.f32.mrf.mxu0
    %v647 = vadd.f32 %v215, %v646
    %648 = vmatprep.mubr.f32.mxu0 0.0
    %649 = vmatmul.mubr.f32.gmra.mxu0 %v107
    %v650 = vpop.f32.mrf.mxu0
    %v651 = vadd.f32 %v211, %v650
    %v652 = vpop.f32.mrf.mxu0
    %v653 = vadd.f32 %v215, %v652
    %654 = vmatprep.mubr.f32.mxu0 0.0
    %655 = vmatmul.mubr.f32.gmra.mxu0 %v108
    %v656 = vpop.f32.mrf.mxu0
    %v657 = vadd.f32 %v211, %v656
    %v658 = vpop.f32.mrf.mxu0
    %v659 = vadd.f32 %v215, %v658
    %660 = vmatprep.mubr.f32.mxu0 0.0
    %661 = vmatmul.mubr.f32.gmra.mxu0 %v109
    %v662 = vpop.f32.mrf.mxu0
    %v663 = vadd.f32 %v211, %v662
    %v664 = vpop.f32.mrf.mxu0
    %v665 = vadd.f32 %v215, %v664
    %666 = vmatprep.mubr.f32.mxu0 0.0
    %667 = vmatmul.mubr.f32.gmra.mxu0 %v110
    %v668 = vpop.f32.mrf.mxu0
    %v669 = vadd.f32 %v211, %v668
    %v670 = vpop.f32.mrf.mxu0
    %v671 = vadd.f32 %v215, %v670
    %672 = vmatprep.mubr.f32.mxu0 0.0
    %673 = vmatmul.mubr.f32.gmra.mxu0 %v111
    %v674 = vpop.f32.mrf.mxu0
    %v675 = vadd.f32 %v211, %v674
    %v676 = vpop.f32.mrf.mxu0
    %v677 = vadd.f32 %v215, %v676
    %678 = vmatprep.mubr.f32.mxu0 0.0
    %679 = vmatmul.mubr.f32.gmra.mxu0 %v112
    %v680 = vpop.f32.mrf.mxu0
    %v681 = vadd.f32 %v211, %v680
    %v682 = vpop.f32.mrf.mxu0
    %v683 = vadd.f32 %v215, %v682
    %684 = vmatprep.mubr.f32.mxu0 0.0
    %685 = vmatmul.mubr.f32.gmra.mxu0 %v113
    %v686 = vpop.f32.mrf.mxu0
    %v687 = vadd.f32 %v211, %v686
    %v688 = vpop.f32.mrf.mxu0
    %v689 = vadd.f32 %v215, %v688
    %690 = vmatprep.mubr.f32.mxu0 0.0
    %691 = vmatmul.mubr.f32.gmra.mxu0 %v114
    %v692 = vpop.f32.mrf.mxu0
    %v693 = vadd.f32 %v211, %v692
    %v694 = vpop.f32.mrf.mxu0
    %v695 = vadd.f32 %v215, %v694
    %696 = vmatprep.mubr.f32.mxu0 0.0
    %697 = vmatmul.mubr.f32.gmra.mxu0 %v115
    %v698 = vpop.f32.mrf.mxu0
    %v699 = vadd.f32 %v211, %v698
    %v700 = vpop.f32.mrf.mxu0
    %v701 = vadd.f32 %v215, %v700
    %702 = vmatprep.mubr.f32.mxu0 0.0
    %703 = vmatmul.mubr.f32.gmra.mxu0 %v116
    %v704 = vpop.f32.mrf.mxu0
    %v705 = vadd.f32 %v211, %v704
    %v706 = vpop.f32.mrf.mxu0
    %v707 = vadd.f32 %v215, %v706
    %708 = vmatprep.mubr.f32.mxu0 0.0
    %709 = vmatmul.mubr.f32.gmra.mxu0 %v117
    %v710 = vpop.f32.mrf.mxu0
    %v711 = vadd.f32 %v211, %v710
    %v712 = vpop.f32.mrf.mxu0
    %v713 = vadd.f32 %v215, %v712
    %714 = vmatprep.mubr.f32.mxu0 0.0
    %715 = vmatmul.mubr.f32.gmra.mxu0 %v118
    %v716 = vpop.f32.mrf.mxu0
    %v717 = vadd.f32 %v211, %v716
    %v718 = vpop.f32.mrf.mxu0
    %v719 = vadd.f32 %v215, %v718
    %720 = vmatprep.mubr.f32.mxu0 0.0
    %721 = vmatmul.mubr.f32.gmra.mxu0 %v119
    %v722 = vpop.f32.mrf.mxu0
    %v723 = vadd.f32 %v211, %v722
    %v724 = vpop.f32.mrf.mxu0
    %v725 = vadd.f32 %v215, %v724
    %726 = vmatprep.mubr.f32.mxu0 0.0
    %727 = vmatmul.mubr.f32.gmra.mxu0 %v120
    %v728 = vpop.f32.mrf.mxu0
    %v729 = vadd.f32 %v211, %v728
    %v730 = vpop.f32.mrf.mxu0
    %v731 = vadd.f32 %v215, %v730
    %732 = vmatprep.mubr.f32.mxu0 0.0
    %733 = vmatmul.mubr.f32.gmra.mxu0 %v121
    %v734 = vpop.f32.mrf.mxu0
    %v735 = vadd.f32 %v211, %v734
    %v736 = vpop.f32.mrf.mxu0
    %v737 = vadd.f32 %v215, %v736
    %738 = vmatprep.mubr.f32.mxu0 0.0
    %739 = vmatmul.mubr.f32.gmra.mxu0 %v122
    %v740 = vpop.f32.mrf.mxu0
    %v741 = vadd.f32 %v211, %v740
    %v742 = vpop.f32.mrf.mxu0
    %v743 = vadd.f32 %v215, %v742
    %744 = vmatprep.mubr.f32.mxu0 0.0
    %745 = vmatmul.mubr.f32.gmra.mxu0 %v123
    %v746 = vpop.f32.mrf.mxu0
    %v747 = vadd.f32 %v211, %v746
    %v748 = vpop.f32.mrf.mxu0
    %v749 = vadd.f32 %v215, %v748
    %750 = vmatprep.mubr.f32.mxu0 0.0
    %751 = vmatmul.mubr.f32.gmra.mxu0 %v124
    %v752 = vpop.f32.mrf.mxu0
    %v753 = vadd.f32 %v211, %v752
    %v754 = vpop.f32.mrf.mxu0
    %v755 = vadd.f32 %v215, %v754
    %756 = vmatprep.mubr.f32.mxu0 0.0
    %757 = vmatmul.mubr.f32.gmra.mxu0 %v125
    %v758 = vpop.f32.mrf.mxu0
    %v759 = vadd.f32 %v211, %v758
    %v760 = vpop.f32.mrf.mxu0
    %v761 = vadd.f32 %v215, %v760
    %762 = vmatprep.mubr.f32.mxu0 0.0
    %763 = vmatmul.mubr.f32.gmra.mxu0 %v126
    %v764 = vpop.f32.mrf.mxu0
    %v765 = vadd.f32 %v211, %v764
    %v766 = vpop.f32.mrf.mxu0
    %v767 = vadd.f32 %v215, %v766
    %768 = vmatprep.mubr.f32.mxu0 0.0
    %769 = vmatmul.mubr.f32.gmra.mxu0 %v127
    %v770 = vpop.f32.mrf.mxu0
    %v771 = vadd.f32 %v211, %v770
    %v772 = vpop.f32.mrf.mxu0
    %v773 = vadd.f32 %v215, %v772
    %774 = vmatprep.mubr.f32.mxu0 0.0
    %775 = vmatmul.mubr.f32.gmra.mxu0 %v128
    %v776 = vpop.f32.mrf.mxu0
    %v777 = vadd.f32 %v211, %v776
    %v778 = vpop.f32.mrf.mxu0
    %v779 = vadd.f32 %v215, %v778
    %780 = vmatprep.mubr.f32.mxu0 0.0
    %781 = vmatmul.mubr.f32.gmra.mxu0 %v129
    %v782 = vpop.f32.mrf.mxu0
    %v783 = vadd.f32 %v211, %v782
    %v784 = vpop.f32.mrf.mxu0
    %v785 = vadd.f32 %v215, %v784
    %786 = vmatprep.mubr.f32.mxu0 0.0
    %787 = vmatmul.mubr.f32.gmra.mxu0 %v130
    %v788 = vpop.f32.mrf.mxu0
    %v789 = vadd.f32 %v211, %v788
    %v790 = vpop.f32.mrf.mxu0
    %v791 = vadd.f32 %v215, %v790
    %792 = vmatprep.mubr.f32.mxu0 0.0
    %793 = vmatmul.mubr.f32.gmra.mxu0 %v131
    %v794 = vpop.f32.mrf.mxu0
    %v795 = vadd.f32 %v211, %v794
    %v796 = vpop.f32.mrf.mxu0
    %v797 = vadd.f32 %v215, %v796
    %798 = vmatprep.mubr.f32.mxu0 0.0
    %799 = vmatmul.mubr.f32.gmra.mxu0 %v132
    %v800 = vpop.f32.mrf.mxu0
    %v801 = vadd.f32 %v211, %v800
    %v802 = vpop.f32.mrf.mxu0
    %v803 = vadd.f32 %v215, %v802
    %804 = vmatprep.mubr.f32.mxu0 0.0
    %805 = vmatmul.mubr.f32.gmra.mxu0 %v133
    %v806 = vpop.f32.mrf.mxu0
    %v807 = vadd.f32 %v211, %v806
    %v808 = vpop.f32.mrf.mxu0
    %v809 = vadd.f32 %v215, %v808
    %810 = vmatprep.mubr.f32.mxu0 0.0
    %811 = vmatmul.mubr.f32.gmra.mxu0 %v134
    %v812 = vpop.f32.mrf.mxu0
    %v813 = vadd.f32 %v211, %v812
    %v814 = vpop.f32.mrf.mxu0
    %v815 = vadd.f32 %v215, %v814
    %816 = vmatprep.mubr.f32.mxu0 0.0
    %817 = vmatmul.mubr.f32.gmra.mxu0 %v135
    %v818 = vpop.f32.mrf.mxu0
    %v819 = vadd.f32 %v211, %v818
    %v820 = vpop.f32.mrf.mxu0
    %v821 = vadd.f32 %v215, %v820
    %822 = vmatprep.mubr.f32.mxu0 0.0
    %823 = vmatmul.mubr.f32.gmra.mxu0 %v136
    %v824 = vpop.f32.mrf.mxu0
    %v825 = vadd.f32 %v211, %v824
    %v826 = vpop.f32.mrf.mxu0
    %v827 = vadd.f32 %v215, %v826
    %828 = vmatprep.mubr.f32.mxu0 0.0
    %829 = vmatmul.mubr.f32.gmra.mxu0 %v137
    %v830 = vpop.f32.mrf.mxu0
    %v831 = vadd.f32 %v211, %v830
    %v832 = vpop.f32.mrf.mxu0
    %v833 = vadd.f32 %v215, %v832
    %834 = vmatprep.mubr.f32.mxu0 0.0
    %835 = vmatmul.mubr.f32.gmra.mxu0 %v138
    %v836 = vpop.f32.mrf.mxu0
    %v837 = vadd.f32 %v211, %v836
    %v838 = vpop.f32.mrf.mxu0
    %v839 = vadd.f32 %v215, %v838
    %840 = vmatprep.mubr.f32.mxu0 0.0
    %841 = vmatmul.mubr.f32.gmra.mxu0 %v139
    %v842 = vpop.f32.mrf.mxu0
    %v843 = vadd.f32 %v211, %v842
    %v844 = vpop.f32.mrf.mxu0
    %v845 = vadd.f32 %v215, %v844
    %846 = vmatprep.mubr.f32.mxu0 0.0
    %847 = vmatmul.mubr.f32.gmra.mxu0 %v140
    %v848 = vpop.f32.mrf.mxu0
    %v849 = vadd.f32 %v211, %v848
    %v850 = vpop.f32.mrf.mxu0
    %v851 = vadd.f32 %v215, %v850
    %852 = vmatprep.mubr.f32.mxu0 0.0
    %853 = vmatmul.mubr.f32.gmra.mxu0 %v141
    %v854 = vpop.f32.mrf.mxu0
    %v855 = vadd.f32 %v211, %v854
    %v856 = vpop.f32.mrf.mxu0
    %v857 = vadd.f32 %v215, %v856
    %858 = vmatprep.mubr.f32.mxu0 0.0
    %859 = vmatmul.mubr.f32.gmra.mxu0 %v142
    %v860 = vpop.f32.mrf.mxu0
    %v861 = vadd.f32 %v211, %v860
    %v862 = vpop.f32.mrf.mxu0
    %v863 = vadd.f32 %v215, %v862
    %864 = vmatprep.mubr.f32.mxu0 0.0
    %865 = vmatmul.mubr.f32.gmra.mxu0 %v143
    %v866 = vpop.f32.mrf.mxu0
    %v867 = vadd.f32 %v211, %v866
    %v868 = vpop.f32.mrf.mxu0
    %v869 = vadd.f32 %v215, %v868
    %870 = vmatprep.mubr.f32.mxu0 0.0
    %871 = vmatmul.mubr.f32.gmra.mxu0 %v144
    %v872 = vpop.f32.mrf.mxu0
    %v873 = vadd.f32 %v211, %v872
    %v874 = vpop.f32.mrf.mxu0
    %v875 = vadd.f32 %v215, %v874
    %876 = vmatprep.mubr.f32.mxu0 0.0
    %877 = vmatmul.mubr.f32.gmra.mxu0 %v145
    %v878 = vpop.f32.mrf.mxu0
    %v879 = vadd.f32 %v211, %v878
    %v880 = vpop.f32.mrf.mxu0
    %v881 = vadd.f32 %v215, %v880
    %882 = vmatprep.mubr.f32.mxu0 0.0
    %883 = vmatmul.mubr.f32.gmra.mxu0 %v146
    %v884 = vpop.f32.mrf.mxu0
    %v885 = vadd.f32 %v211, %v884
    %v886 = vpop.f32.mrf.mxu0
    %v887 = vadd.f32 %v215, %v886
    %888 = vmatprep.mubr.f32.mxu0 0.0
    %889 = vmatmul.mubr.f32.gmra.mxu0 %v147
    %v890 = vpop.f32.mrf.mxu0
    %v891 = vadd.f32 %v211, %v890
    %v892 = vpop.f32.mrf.mxu0
    %v893 = vadd.f32 %v215, %v892
    %894 = vmatprep.mubr.f32.mxu0 0.0
    %895 = vmatmul.mubr.f32.gmra.mxu0 %v148
    %v896 = vpop.f32.mrf.mxu0
    %v897 = vadd.f32 %v211, %v896
    %v898 = vpop.f32.mrf.mxu0
    %v899 = vadd.f32 %v215, %v898
    %900 = vmatprep.mubr.f32.mxu0 0.0
    %901 = vmatmul.mubr.f32.gmra.mxu0 %v149
    %v902 = vpop.f32.mrf.mxu0
    %v903 = vadd.f32 %v211, %v902
    %v904 = vpop.f32.mrf.mxu0
    %v905 = vadd.f32 %v215, %v904
    %906 = vmatprep.mubr.f32.mxu0 0.0
    %907 = vmatmul.mubr.f32.gmra.mxu0 %v150
    %v908 = vpop.f32.mrf.mxu0
    %v909 = vadd.f32 %v211, %v908
    %v910 = vpop.f32.mrf.mxu0
    %v911 = vadd.f32 %v215, %v910
    %912 = vmatprep.mubr.f32.mxu0 0.0
    %913 = vmatmul.mubr.f32.gmra.mxu0 %v151
    %v914 = vpop.f32.mrf.mxu0
    %v915 = vadd.f32 %v211, %v914
    %v916 = vpop.f32.mrf.mxu0
    %v917 = vadd.f32 %v215, %v916
    %918 = vmatprep.mubr.f32.mxu0 0.0
    %919 = vmatmul.mubr.f32.gmra.mxu0 %v152
    %v920 = vpop.f32.mrf.mxu0
    %v921 = vadd.f32 %v211, %v920
    %v922 = vpop.f32.mrf.mxu0
    %v923 = vadd.f32 %v215, %v922
    %924 = vmatprep.mubr.f32.mxu0 0.0
    %925 = vmatmul.mubr.f32.gmra.mxu0 %v153
    %v926 = vpop.f32.mrf.mxu0
    %v927 = vadd.f32 %v211, %v926
    %v928 = vpop.f32.mrf.mxu0
    %v929 = vadd.f32 %v215, %v928
    %930 = vmatprep.mubr.f32.mxu0 0.0
    %931 = vmatmul.mubr.f32.gmra.mxu0 %v154
    %v932 = vpop.f32.mrf.mxu0
    %v933 = vadd.f32 %v211, %v932
    %v934 = vpop.f32.mrf.mxu0
    %v935 = vadd.f32 %v215, %v934
    %936 = vmatprep.mubr.f32.mxu0 0.0
    %937 = vmatmul.mubr.f32.gmra.mxu0 %v155
    %v938 = vpop.f32.mrf.mxu0
    %v939 = vadd.f32 %v211, %v938
    %v940 = vpop.f32.mrf.mxu0
    %v941 = vadd.f32 %v215, %v940
    %942 = vmatprep.mubr.f32.mxu0 0.0
    %943 = vmatmul.mubr.f32.gmra.mxu0 %v156
    %v944 = vpop.f32.mrf.mxu0
    %v945 = vadd.f32 %v211, %v944
    %v946 = vpop.f32.mrf.mxu0
    %v947 = vadd.f32 %v215, %v946
    %948 = vmatprep.mubr.f32.mxu0 0.0
    %949 = vmatmul.mubr.f32.gmra.mxu0 %v157
    %v950 = vpop.f32.mrf.mxu0
    %v951 = vadd.f32 %v211, %v950
    %v952 = vpop.f32.mrf.mxu0
    %v953 = vadd.f32 %v215, %v952
    %954 = vmatprep.mubr.f32.mxu0 0.0
    %955 = vmatmul.mubr.f32.gmra.mxu0 %v158
    %v956 = vpop.f32.mrf.mxu0
    %v957 = vadd.f32 %v211, %v956
    %v958 = vpop.f32.mrf.mxu0
    %v959 = vadd.f32 %v215, %v958
    %960 = vmatprep.mubr.f32.mxu0 0.0
    %961 = vmatmul.mubr.f32.gmra.mxu0 %v159
    %v962 = vpop.f32.mrf.mxu0
    %v963 = vadd.f32 %v211, %v962
    %v964 = vpop.f32.mrf.mxu0
    %v965 = vadd.f32 %v215, %v964
    %966 = vmatprep.mubr.f32.mxu0 0.0
    %967 = vmatmul.mubr.f32.gmra.mxu0 %v160
    %v968 = vpop.f32.mrf.mxu0
    %v969 = vadd.f32 %v211, %v968
    %v970 = vpop.f32.mrf.mxu0
    %v971 = vadd.f32 %v215, %v970
    %972 = vmatprep.mubr.f32.mxu0 0.0
    %973 = vmatmul.mubr.f32.gmra.mxu0 %v161
    %v974 = vpop.f32.mrf.mxu0
    %v975 = vadd.f32 %v211, %v974
    %v976 = vpop.f32.mrf.mxu0
    %v977 = vadd.f32 %v215, %v976
    %978 = vmatprep.mubr.f32.mxu0 0.0
    %979 = vmatmul.mubr.f32.gmra.mxu0 %v162
    %v980 = vpop.f32.mrf.mxu0
    %v981 = vadd.f32 %v211, %v980
    %v982 = vpop.f32.mrf.mxu0
    %v983 = vadd.f32 %v215, %v982
    %984 = vmatprep.mubr.f32.mxu0 0.0
    %985 = vmatmul.mubr.f32.gmra.mxu0 %v163
    %v986 = vpop.f32.mrf.mxu0
    %v987 = vadd.f32 %v211, %v986
    %v988 = vpop.f32.mrf.mxu0
    %v989 = vadd.f32 %v215, %v988
    %990 = vmatprep.mubr.f32.mxu0 0.0
    %991 = vmatmul.mubr.f32.gmra.mxu0 %v164
    %v992 = vpop.f32.mrf.mxu0
    %v993 = vadd.f32 %v211, %v992
    %v994 = vpop.f32.mrf.mxu0
    %v995 = vadd.f32 %v215, %v994
    %996 = vmatprep.mubr.f32.mxu0 0.0
    %997 = vmatmul.mubr.f32.gmra.mxu0 %v165
    %v998 = vpop.f32.mrf.mxu0
    %v999 = vadd.f32 %v211, %v998
    %v1000 = vpop.f32.mrf.mxu0
    %v1001 = vadd.f32 %v215, %v1000
    %1002 = vmatprep.mubr.f32.mxu0 0.0
    %1003 = vmatmul.mubr.f32.gmra.mxu0 %v166
    %v1004 = vpop.f32.mrf.mxu0
    %v1005 = vadd.f32 %v211, %v1004
    %v1006 = vpop.f32.mrf.mxu0
    %v1007 = vadd.f32 %v215, %v1006
    %1008 = vmatprep.mubr.f32.mxu0 0.0
    %1009 = vmatmul.mubr.f32.gmra.mxu0 %v167
    %v1010 = vpop.f32.mrf.mxu0
    %v1011 = vadd.f32 %v211, %v1010
    %v1012 = vpop.f32.mrf.mxu0
    %v1013 = vadd.f32 %v215, %v1012
    %1014 = vmatprep.mubr.f32.mxu0 0.0
    %1015 = vmatmul.mubr.f32.gmra.mxu0 %v168
    %v1016 = vpop.f32.mrf.mxu0
    %v1017 = vadd.f32 %v211, %v1016
    %v1018 = vpop.f32.mrf.mxu0
    %v1019 = vadd.f32 %v215, %v1018
    %1020 = vmatprep.mubr.f32.mxu0 0.0
    %1021 = vmatmul.mubr.f32.gmra.mxu0 %v169
    %v1022 = vpop.f32.mrf.mxu0
    %v1023 = vadd.f32 %v211, %v1022
    %v1024 = vpop.f32.mrf.mxu0
    %v1025 = vadd.f32 %v215, %v1024
    %1026 = vmatprep.mubr.f32.mxu0 0.0
    %1027 = vmatmul.mubr.f32.gmra.mxu0 %v170
    %v1028 = vpop.f32.mrf.mxu0
    %v1029 = vadd.f32 %v211, %v1028
    %v1030 = vpop.f32.mrf.mxu0
    %v1031 = vadd.f32 %v215, %v1030
    %1032 = vmatprep.mubr.f32.mxu0 0.0
    %1033 = vmatmul.mubr.f32.gmra.mxu0 %v171
    %v1034 = vpop.f32.mrf.mxu0
    %v1035 = vadd.f32 %v211, %v1034
    %v1036 = vpop.f32.mrf.mxu0
    %v1037 = vadd.f32 %v215, %v1036
    %1038 = vmatprep.mubr.f32.mxu0 0.0
    %1039 = vmatmul.mubr.f32.gmra.mxu0 %v172
    %v1040 = vpop.f32.mrf.mxu0
    %v1041 = vadd.f32 %v211, %v1040
    %v1042 = vpop.f32.mrf.mxu0
    %v1043 = vadd.f32 %v215, %v1042
    %1044 = vmatprep.mubr.f32.mxu0 0.0
    %1045 = vmatmul.mubr.f32.gmra.mxu0 %v173
    %v1046 = vpop.f32.mrf.mxu0
    %v1047 = vadd.f32 %v211, %v1046
    %v1048 = vpop.f32.mrf.mxu0
    %v1049 = vadd.f32 %v215, %v1048
    %1050 = vdwg.mxu0
    %1051 = vst [vmem:[#allocation7] sm:$0xff] %v285
    %1052 = vst [vmem:[#allocation7 + $0x8] sm:$0xff] %v291
    %1053 = vst [vmem:[#allocation7 + $0x10] sm:$0xff] %v297
    %1054 = vst [vmem:[#allocation7 + $0x18] sm:$0xff] %v303
    %1055 = vst [vmem:[#allocation7 + $0x20] sm:$0xff] %v309
    %1056 = vst [vmem:[#allocation7 + $0x28] sm:$0xff] %v315
    %1057 = vst [vmem:[#allocation7 + $0x30] sm:$0xff] %v321
    %1058 = vst [vmem:[#allocation7 + $0x38] sm:$0xff] %v327
    %1059 = vst [vmem:[#allocation7 + $0x40] sm:$0xff] %v333
    %1060 = vst [vmem:[#allocation7 + $0x48] sm:$0xff] %v339
    %1061 = vst [vmem:[#allocation7 + $0x50] sm:$0xff] %v345
    %1062 = vst [vmem:[#allocation7 + $0x58] sm:$0xff] %v351
    %1063 = vst [vmem:[#allocation7 + $0x60] sm:$0xff] %v357
    %1064 = vst [vmem:[#allocation7 + $0x68] sm:$0xff] %v363
    %1065 = vst [vmem:[#allocation7 + $0x70] sm:$0xff] %v369
    %1066 = vst [vmem:[#allocation7 + $0x78] sm:$0xff] %v375
    %1067 = vst [vmem:[#allocation7 + $0x80] sm:$0xff] %v381
    %1068 = vst [vmem:[#allocation7 + $0x88] sm:$0xff] %v387
    %1069 = vst [vmem:[#allocation7 + $0x90] sm:$0xff] %v393
    %1070 = vst [vmem:[#allocation7 + $0x98] sm:$0xff] %v399
    %1071 = vst [vmem:[#allocation7 + $0xa0] sm:$0xff] %v405
    %1072 = vst [vmem:[#allocation7 + $0xa8] sm:$0xff] %v411
    %1073 = vst [vmem:[#allocation7 + $0xb0] sm:$0xff] %v417
    %1074 = vst [vmem:[#allocation7 + $0xb8] sm:$0xff] %v423
    %1075 = vst [vmem:[#allocation7 + $0xc0] sm:$0xff] %v429
    %1076 = vst [vmem:[#allocation7 + $0xc8] sm:$0xff] %v435
    %1077 = vst [vmem:[#allocation7 + $0xd0] sm:$0xff] %v441
    %1078 = vst [vmem:[#allocation7 + $0xd8] sm:$0xff] %v447
    %1079 = vst [vmem:[#allocation7 + $0xe0] sm:$0xff] %v453
    %1080 = vst [vmem:[#allocation7 + $0xe8] sm:$0xff] %v459
    %1081 = vst [vmem:[#allocation7 + $0xf0] sm:$0xff] %v465
    %1082 = vst [vmem:[#allocation7 + $0xf8] sm:$0xff] %v471
    %1083 = vst [vmem:[#allocation7 + $0x100] sm:$0xff] %v477
    %1084 = vst [vmem:[#allocation7 + $0x108] sm:$0xff] %v483
    %1085 = vst [vmem:[#allocation7 + $0x110] sm:$0xff] %v489
    %1086 = vst [vmem:[#allocation7 + $0x118] sm:$0xff] %v495
    %1087 = vst [vmem:[#allocation7 + $0x120] sm:$0xff] %v501
    %1088 = vst [vmem:[#allocation7 + $0x128] sm:$0xff] %v507
    %1089 = vst [vmem:[#allocation7 + $0x130] sm:$0xff] %v513
    %1090 = vst [vmem:[#allocation7 + $0x138] sm:$0xff] %v519
    %1091 = vst [vmem:[#allocation7 + $0x140] sm:$0xff] %v525
    %1092 = vst [vmem:[#allocation7 + $0x148] sm:$0xff] %v531
    %1093 = vst [vmem:[#allocation7 + $0x150] sm:$0xff] %v537
    %1094 = vst [vmem:[#allocation7 + $0x158] sm:$0xff] %v543
    %1095 = vst [vmem:[#allocation7 + $0x160] sm:$0xff] %v549
    %1096 = vst [vmem:[#allocation7 + $0x168] sm:$0xff] %v555
    %1097 = vst [vmem:[#allocation7 + $0x170] sm:$0xff] %v561
    %1098 = vst [vmem:[#allocation7 + $0x178] sm:$0xff] %v567
    %1099 = vst [vmem:[#allocation7 + $0x180] sm:$0xff] %v573
    %1100 = vst [vmem:[#allocation7 + $0x188] sm:$0xff] %v579
    %1101 = vst [vmem:[#allocation7 + $0x190] sm:$0xff] %v585
    %1102 = vst [vmem:[#allocation7 + $0x198] sm:$0xff] %v591
    %1103 = vst [vmem:[#allocation7 + $0x1a0] sm:$0xff] %v597
    %1104 = vst [vmem:[#allocation7 + $0x1a8] sm:$0xff] %v603
    %1105 = vst [vmem:[#allocation7 + $0x1b0] sm:$0xff] %v609
    %1106 = vst [vmem:[#allocation7 + $0x1b8] sm:$0xff] %v615
    %1107 = vst [vmem:[#allocation7 + $0x1c0] sm:$0xff] %v621
    %1108 = vst [vmem:[#allocation7 + $0x1c8] sm:$0xff] %v627
    %1109 = vst [vmem:[#allocation7 + $0x1d0] sm:$0xff] %v633
    %1110 = vst [vmem:[#allocation7 + $0x1d8] sm:$0xff] %v639
    %1111 = vst [vmem:[#allocation7 + $0x1e0] sm:$0xff] %v645
    %1112 = vst [vmem:[#allocation7 + $0x1e8] sm:$0xff] %v651
    %1113 = vst [vmem:[#allocation7 + $0x1f0] sm:$0xff] %v657
    %1114 = vst [vmem:[#allocation7 + $0x1f8] sm:$0xff] %v663
    %1115 = vst [vmem:[#allocation7 + $0x200] sm:$0xff] %v669
    %1116 = vst [vmem:[#allocation7 + $0x208] sm:$0xff] %v675
    %1117 = vst [vmem:[#allocation7 + $0x210] sm:$0xff] %v681
    %1118 = vst [vmem:[#allocation7 + $0x218] sm:$0xff] %v687
    %1119 = vst [vmem:[#allocation7 + $0x220] sm:$0xff] %v693
    %1120 = vst [vmem:[#allocation7 + $0x228] sm:$0xff] %v699
    %1121 = vst [vmem:[#allocation7 + $0x230] sm:$0xff] %v705
    %1122 = vst [vmem:[#allocation7 + $0x238] sm:$0xff] %v711
    %1123 = vst [vmem:[#allocation7 + $0x240] sm:$0xff] %v717
    %1124 = vst [vmem:[#allocation7 + $0x248] sm:$0xff] %v723
    %1125 = vst [vmem:[#allocation7 + $0x250] sm:$0xff] %v729
    %1126 = vst [vmem:[#allocation7 + $0x258] sm:$0xff] %v735
    %1127 = vst [vmem:[#allocation7 + $0x260] sm:$0xff] %v741
    %1128 = vst [vmem:[#allocation7 + $0x268] sm:$0xff] %v747
    %1129 = vst [vmem:[#allocation7 + $0x270] sm:$0xff] %v753
    %1130 = vst [vmem:[#allocation7 + $0x278] sm:$0xff] %v759
    %1131 = vst [vmem:[#allocation7 + $0x280] sm:$0xff] %v765
    %1132 = vst [vmem:[#allocation7 + $0x288] sm:$0xff] %v771
    %1133 = vst [vmem:[#allocation7 + $0x290] sm:$0xff] %v777
    %1134 = vst [vmem:[#allocation7 + $0x298] sm:$0xff] %v783
    %1135 = vst [vmem:[#allocation7 + $0x2a0] sm:$0xff] %v789
    %1136 = vst [vmem:[#allocation7 + $0x2a8] sm:$0xff] %v795
    %1137 = vst [vmem:[#allocation7 + $0x2b0] sm:$0xff] %v801
    %1138 = vst [vmem:[#allocation7 + $0x2b8] sm:$0xff] %v807
    %1139 = vst [vmem:[#allocation7 + $0x2c0] sm:$0xff] %v813
    %1140 = vst [vmem:[#allocation7 + $0x2c8] sm:$0xff] %v819
    %1141 = vst [vmem:[#allocation7 + $0x2d0] sm:$0xff] %v825
    %1142 = vst [vmem:[#allocation7 + $0x2d8] sm:$0xff] %v831
    %1143 = vst [vmem:[#allocation7 + $0x2e0] sm:$0xff] %v837
    %1144 = vst [vmem:[#allocation7 + $0x2e8] sm:$0xff] %v843
    %1145 = vst [vmem:[#allocation7 + $0x2f0] sm:$0xff] %v849
    %1146 = vst [vmem:[#allocation7 + $0x2f8] sm:$0xff] %v855
    %1147 = vst [vmem:[#allocation7 + $0x300] sm:$0xff] %v861
    %1148 = vst [vmem:[#allocation7 + $0x308] sm:$0xff] %v867
    %1149 = vst [vmem:[#allocation7 + $0x310] sm:$0xff] %v873
    %1150 = vst [vmem:[#allocation7 + $0x318] sm:$0xff] %v879
    %1151 = vst [vmem:[#allocation7 + $0x320] sm:$0xff] %v885
    %1152 = vst [vmem:[#allocation7 + $0x328] sm:$0xff] %v891
    %1153 = vst [vmem:[#allocation7 + $0x330] sm:$0xff] %v897
    %1154 = vst [vmem:[#allocation7 + $0x338] sm:$0xff] %v903
    %1155 = vst [vmem:[#allocation7 + $0x340] sm:$0xff] %v909
    %1156 = vst [vmem:[#allocation7 + $0x348] sm:$0xff] %v915
    %1157 = vst [vmem:[#allocation7 + $0x350] sm:$0xff] %v921
    %1158 = vst [vmem:[#allocation7 + $0x358] sm:$0xff] %v927
    %1159 = vst [vmem:[#allocation7 + $0x360] sm:$0xff] %v933
    %1160 = vst [vmem:[#allocation7 + $0x368] sm:$0xff] %v939
    %1161 = vst [vmem:[#allocation7 + $0x370] sm:$0xff] %v945
    %1162 = vst [vmem:[#allocation7 + $0x378] sm:$0xff] %v951
    %1163 = vst [vmem:[#allocation7 + $0x380] sm:$0xff] %v957
    %1164 = vst [vmem:[#allocation7 + $0x388] sm:$0xff] %v963
    %1165 = vst [vmem:[#allocation7 + $0x390] sm:$0xff] %v969
    %1166 = vst [vmem:[#allocation7 + $0x398] sm:$0xff] %v975
    %1167 = vst [vmem:[#allocation7 + $0x3a0] sm:$0xff] %v981
    %1168 = vst [vmem:[#allocation7 + $0x3a8] sm:$0xff] %v987
    %1169 = vst [vmem:[#allocation7 + $0x3b0] sm:$0xff] %v993
    %1170 = vst [vmem:[#allocation7 + $0x3b8] sm:$0xff] %v999
    %1171 = vst [vmem:[#allocation7 + $0x3c0] sm:$0xff] %v1005
    %1172 = vst [vmem:[#allocation7 + $0x3c8] sm:$0xff] %v1011
    %1173 = vst [vmem:[#allocation7 + $0x3d0] sm:$0xff] %v1017
    %1174 = vst [vmem:[#allocation7 + $0x3d8] sm:$0xff] %v1023
    %1175 = vst [vmem:[#allocation7 + $0x3e0] sm:$0xff] %v1029
    %1176 = vst [vmem:[#allocation7 + $0x3e8] sm:$0xff] %v1035
    %1177 = vst [vmem:[#allocation7 + $0x3f0] sm:$0xff] %v1041
    %1178 = vst [vmem:[#allocation7 + $0x3f8] sm:$0xff] %v1047
    %1179 = vst [vmem:[#allocation8] sm:$0xff] %v287
    %1180 = vst [vmem:[#allocation8 + $0x8] sm:$0xff] %v293
    %1181 = vst [vmem:[#allocation8 + $0x10] sm:$0xff] %v299
    %1182 = vst [vmem:[#allocation8 + $0x18] sm:$0xff] %v305
    %1183 = vst [vmem:[#allocation8 + $0x20] sm:$0xff] %v311
    %1184 = vst [vmem:[#allocation8 + $0x28] sm:$0xff] %v317
    %1185 = vst [vmem:[#allocation8 + $0x30] sm:$0xff] %v323
    %1186 = vst [vmem:[#allocation8 + $0x38] sm:$0xff] %v329
    %1187 = vst [vmem:[#allocation8 + $0x40] sm:$0xff] %v335
    %1188 = vst [vmem:[#allocation8 + $0x48] sm:$0xff] %v341
    %1189 = vst [vmem:[#allocation8 + $0x50] sm:$0xff] %v347
    %1190 = vst [vmem:[#allocation8 + $0x58] sm:$0xff] %v353
    %1191 = vst [vmem:[#allocation8 + $0x60] sm:$0xff] %v359
    %1192 = vst [vmem:[#allocation8 + $0x68] sm:$0xff] %v365
    %1193 = vst [vmem:[#allocation8 + $0x70] sm:$0xff] %v371
    %1194 = vst [vmem:[#allocation8 + $0x78] sm:$0xff] %v377
    %1195 = vst [vmem:[#allocation8 + $0x80] sm:$0xff] %v383
    %1196 = vst [vmem:[#allocation8 + $0x88] sm:$0xff] %v389
    %1197 = vst [vmem:[#allocation8 + $0x90] sm:$0xff] %v395
    %1198 = vst [vmem:[#allocation8 + $0x98] sm:$0xff] %v401
    %1199 = vst [vmem:[#allocation8 + $0xa0] sm:$0xff] %v407
    %1200 = vst [vmem:[#allocation8 + $0xa8] sm:$0xff] %v413
    %1201 = vst [vmem:[#allocation8 + $0xb0] sm:$0xff] %v419
    %1202 = vst [vmem:[#allocation8 + $0xb8] sm:$0xff] %v425
    %1203 = vst [vmem:[#allocation8 + $0xc0] sm:$0xff] %v431
    %1204 = vst [vmem:[#allocation8 + $0xc8] sm:$0xff] %v437
    %1205 = vst [vmem:[#allocation8 + $0xd0] sm:$0xff] %v443
    %1206 = vst [vmem:[#allocation8 + $0xd8] sm:$0xff] %v449
    %1207 = vst [vmem:[#allocation8 + $0xe0] sm:$0xff] %v455
    %1208 = vst [vmem:[#allocation8 + $0xe8] sm:$0xff] %v461
    %1209 = vst [vmem:[#allocation8 + $0xf0] sm:$0xff] %v467
    %1210 = vst [vmem:[#allocation8 + $0xf8] sm:$0xff] %v473
    %1211 = vst [vmem:[#allocation8 + $0x100] sm:$0xff] %v479
    %1212 = vst [vmem:[#allocation8 + $0x108] sm:$0xff] %v485
    %1213 = vst [vmem:[#allocation8 + $0x110] sm:$0xff] %v491
    %1214 = vst [vmem:[#allocation8 + $0x118] sm:$0xff] %v497
    %1215 = vst [vmem:[#allocation8 + $0x120] sm:$0xff] %v503
    %1216 = vst [vmem:[#allocation8 + $0x128] sm:$0xff] %v509
    %1217 = vst [vmem:[#allocation8 + $0x130] sm:$0xff] %v515
    %1218 = vst [vmem:[#allocation8 + $0x138] sm:$0xff] %v521
    %1219 = vst [vmem:[#allocation8 + $0x140] sm:$0xff] %v527
    %1220 = vst [vmem:[#allocation8 + $0x148] sm:$0xff] %v533
    %1221 = vst [vmem:[#allocation8 + $0x150] sm:$0xff] %v539
    %1222 = vst [vmem:[#allocation8 + $0x158] sm:$0xff] %v545
    %1223 = vst [vmem:[#allocation8 + $0x160] sm:$0xff] %v551
    %1224 = vst [vmem:[#allocation8 + $0x168] sm:$0xff] %v557
    %1225 = vst [vmem:[#allocation8 + $0x170] sm:$0xff] %v563
    %1226 = vst [vmem:[#allocation8 + $0x178] sm:$0xff] %v569
    %1227 = vst [vmem:[#allocation8 + $0x180] sm:$0xff] %v575
    %1228 = vst [vmem:[#allocation8 + $0x188] sm:$0xff] %v581
    %1229 = vst [vmem:[#allocation8 + $0x190] sm:$0xff] %v587
    %1230 = vst [vmem:[#allocation8 + $0x198] sm:$0xff] %v593
    %1231 = vst [vmem:[#allocation8 + $0x1a0] sm:$0xff] %v599
    %1232 = vst [vmem:[#allocation8 + $0x1a8] sm:$0xff] %v605
    %1233 = vst [vmem:[#allocation8 + $0x1b0] sm:$0xff] %v611
    %1234 = vst [vmem:[#allocation8 + $0x1b8] sm:$0xff] %v617
    %1235 = vst [vmem:[#allocation8 + $0x1c0] sm:$0xff] %v623
    %1236 = vst [vmem:[#allocation8 + $0x1c8] sm:$0xff] %v629
    %1237 = vst [vmem:[#allocation8 + $0x1d0] sm:$0xff] %v635
    %1238 = vst [vmem:[#allocation8 + $0x1d8] sm:$0xff] %v641
    %1239 = vst [vmem:[#allocation8 + $0x1e0] sm:$0xff] %v647
    %1240 = vst [vmem:[#allocation8 + $0x1e8] sm:$0xff] %v653
    %1241 = vst [vmem:[#allocation8 + $0x1f0] sm:$0xff] %v659
    %1242 = vst [vmem:[#allocation8 + $0x1f8] sm:$0xff] %v665
    %1243 = vst [vmem:[#allocation8 + $0x200] sm:$0xff] %v671
    %1244 = vst [vmem:[#allocation8 + $0x208] sm:$0xff] %v677
    %1245 = vst [vmem:[#allocation8 + $0x210] sm:$0xff] %v683
    %1246 = vst [vmem:[#allocation8 + $0x218] sm:$0xff] %v689
    %1247 = vst [vmem:[#allocation8 + $0x220] sm:$0xff] %v695
    %1248 = vst [vmem:[#allocation8 + $0x228] sm:$0xff] %v701
    %1249 = vst [vmem:[#allocation8 + $0x230] sm:$0xff] %v707
    %1250 = vst [vmem:[#allocation8 + $0x238] sm:$0xff] %v713
    %1251 = vst [vmem:[#allocation8 + $0x240] sm:$0xff] %v719
    %1252 = vst [vmem:[#allocation8 + $0x248] sm:$0xff] %v725
    %1253 = vst [vmem:[#allocation8 + $0x250] sm:$0xff] %v731
    %1254 = vst [vmem:[#allocation8 + $0x258] sm:$0xff] %v737
    %1255 = vst [vmem:[#allocation8 + $0x260] sm:$0xff] %v743
    %1256 = vst [vmem:[#allocation8 + $0x268] sm:$0xff] %v749
    %1257 = vst [vmem:[#allocation8 + $0x270] sm:$0xff] %v755
    %1258 = vst [vmem:[#allocation8 + $0x278] sm:$0xff] %v761
    %1259 = vst [vmem:[#allocation8 + $0x280] sm:$0xff] %v767
    %1260 = vst [vmem:[#allocation8 + $0x288] sm:$0xff] %v773
    %1261 = vst [vmem:[#allocation8 + $0x290] sm:$0xff] %v779
    %1262 = vst [vmem:[#allocation8 + $0x298] sm:$0xff] %v785
    %1263 = vst [vmem:[#allocation8 + $0x2a0] sm:$0xff] %v791
    %1264 = vst [vmem:[#allocation8 + $0x2a8] sm:$0xff] %v797
    %1265 = vst [vmem:[#allocation8 + $0x2b0] sm:$0xff] %v803
    %1266 = vst [vmem:[#allocation8 + $0x2b8] sm:$0xff] %v809
    %1267 = vst [vmem:[#allocation8 + $0x2c0] sm:$0xff] %v815
    %1268 = vst [vmem:[#allocation8 + $0x2c8] sm:$0xff] %v821
    %1269 = vst [vmem:[#allocation8 + $0x2d0] sm:$0xff] %v827
    %1270 = vst [vmem:[#allocation8 + $0x2d8] sm:$0xff] %v833
    %1271 = vst [vmem:[#allocation8 + $0x2e0] sm:$0xff] %v839
    %1272 = vst [vmem:[#allocation8 + $0x2e8] sm:$0xff] %v845
    %1273 = vst [vmem:[#allocation8 + $0x2f0] sm:$0xff] %v851
    %1274 = vst [vmem:[#allocation8 + $0x2f8] sm:$0xff] %v857
    %1275 = vst [vmem:[#allocation8 + $0x300] sm:$0xff] %v863
    %1276 = vst [vmem:[#allocation8 + $0x308] sm:$0xff] %v869
    %1277 = vst [vmem:[#allocation8 + $0x310] sm:$0xff] %v875
    %1278 = vst [vmem:[#allocation8 + $0x318] sm:$0xff] %v881
    %1279 = vst [vmem:[#allocation8 + $0x320] sm:$0xff] %v887
    %1280 = vst [vmem:[#allocation8 + $0x328] sm:$0xff] %v893
    %1281 = vst [vmem:[#allocation8 + $0x330] sm:$0xff] %v899
    %1282 = vst [vmem:[#allocation8 + $0x338] sm:$0xff] %v905
    %1283 = vst [vmem:[#allocation8 + $0x340] sm:$0xff] %v911
    %1284 = vst [vmem:[#allocation8 + $0x348] sm:$0xff] %v917
    %1285 = vst [vmem:[#allocation8 + $0x350] sm:$0xff] %v923
    %1286 = vst [vmem:[#allocation8 + $0x358] sm:$0xff] %v929
    %1287 = vst [vmem:[#allocation8 + $0x360] sm:$0xff] %v935
    %1288 = vst [vmem:[#allocation8 + $0x368] sm:$0xff] %v941
    %1289 = vst [vmem:[#allocation8 + $0x370] sm:$0xff] %v947
    %1290 = vst [vmem:[#allocation8 + $0x378] sm:$0xff] %v953
    %1291 = vst [vmem:[#allocation8 + $0x380] sm:$0xff] %v959
    %1292 = vst [vmem:[#allocation8 + $0x388] sm:$0xff] %v965
    %1293 = vst [vmem:[#allocation8 + $0x390] sm:$0xff] %v971
    %1294 = vst [vmem:[#allocation8 + $0x398] sm:$0xff] %v977
    %1295 = vst [vmem:[#allocation8 + $0x3a0] sm:$0xff] %v983
    %1296 = vst [vmem:[#allocation8 + $0x3a8] sm:$0xff] %v989
    %1297 = vst [vmem:[#allocation8 + $0x3b0] sm:$0xff] %v995
    %1298 = vst [vmem:[#allocation8 + $0x3b8] sm:$0xff] %v1001
    %1299 = vst [vmem:[#allocation8 + $0x3c0] sm:$0xff] %v1007
    %1300 = vst [vmem:[#allocation8 + $0x3c8] sm:$0xff] %v1013
    %1301 = vst [vmem:[#allocation8 + $0x3d0] sm:$0xff] %v1019
    %1302 = vst [vmem:[#allocation8 + $0x3d8] sm:$0xff] %v1025
    %1303 = vst [vmem:[#allocation8 + $0x3e0] sm:$0xff] %v1031
    %1304 = vst [vmem:[#allocation8 + $0x3e8] sm:$0xff] %v1037
    %1305 = vst [vmem:[#allocation8 + $0x3f0] sm:$0xff] %v1043
    %1306 = vst [vmem:[#allocation8 + $0x3f8] sm:$0xff] %v1049
    // Predicated region
    $region22: #{tpu_custom_call.1} parent=1 // pred_check
      _
    $region23: #{tpu_custom_call.1} parent=1 // pred_check_branch
      %1308 = sbr.rel (0) target = $region25
    $region24: #{tpu_custom_call.1} parent=1 // pred_region
      %s1310 = ssub.s32 16384, 16384
      %1311 = vsyncadd [#allocation4], %s1310
      %s1312 = sshll.u32 [#allocation7], 4
      %s1313 = int_to_ptr.vmem [resolvable:$true] %s1312
      %1318 = dma.vmem_to_hbm [thread:$0]  %s1313, 16384, %s3, [#allocation4], 128, 128, 8
    $region25: #{tpu_custom_call.1} parent=1 // pred_fallthru
      _
    // Predicated region
    $region26: #{tpu_custom_call.1} parent=1 // pred_check
      _
    $region27: #{tpu_custom_call.1} parent=1 // pred_check_branch
      %1320 = sbr.rel (0) target = $region29
    $region28: #{tpu_custom_call.1} parent=1 // pred_region
      %s1322 = ssub.s32 16384, 16384
      %1323 = vsyncadd [#allocation9], %s1322
      %s1324 = sshll.u32 [#allocation8], 4
      %s1325 = int_to_ptr.vmem [resolvable:$true] %s1324
      %1330 = dma.vmem_to_hbm [thread:$0]  %s1325, 16384, %s4, [#allocation9], 128, 128, 8
    $region29: #{tpu_custom_call.1} parent=1 // pred_fallthru
      _
    // Predicated region
    $region30: #{tpu_custom_call.1} parent=1 // pred_check
      _
    $region31: #{tpu_custom_call.1} parent=1 // pred_check_branch
      %1332 = sbr.rel (0) target = $region33
    $region32: #{tpu_custom_call.1} parent=1 // pred_region
      %1333 = dma.done [#allocation4], 16384
    $region33: #{tpu_custom_call.1} parent=1 // pred_fallthru
      _
    // Predicated region
    $region34: #{tpu_custom_call.1} parent=1 // pred_check
      _
    $region35: #{tpu_custom_call.1} parent=1 // pred_check_branch
      %1335 = sbr.rel (0) target = $region37
    $region36: #{tpu_custom_call.1} parent=1 // pred_region
      %1336 = dma.done [#allocation9], 16384
    $region37: #{tpu_custom_call.1} parent=1 // pred_fallthru
      _
    %1337 = vsyncpa [#allocation3], 1
    %1338 = vsyncpa [#allocation6], 1
    %1339 = vsyncpa [#allocation4], 1
    %1340 = vsyncpa [#allocation9], 1

</llo_original>
